<compile_context>
chip_gen: v7x
topology: tpu7x:2x2x1
jax: 0.10.0
libtpu: 0.0.40
codegen_flags: <defaults>
</compile_context>

<pallas_src>
import functools

import jax
import jax.numpy as jnp
from jax.experimental import pallas as pl
from jax.experimental.pallas import tpu as pltpu


def _round_up(v, m):
    return ((v + m - 1) // m) * m


def _ghm_kernel(has_last_ref, last_ref, x_ref, t_ref,
                loss_ref, count_ref,
                cnt_sc, ssum_sc,
                *, bins, alpha, n_rows, n_cols, tm):
    pid = pl.program_id(0)

    @pl.when(pid == 0)
    def _init():
        cnt_sc[...] = jnp.zeros_like(cnt_sc)
        ssum_sc[...] = jnp.zeros_like(ssum_sc)

    x = x_ref[...].astype(jnp.float32)
    t = t_ref[...].astype(jnp.float32)

    # Shared transcendental: e = exp(-|x|) feeds sigmoid AND softplus.
    e = jnp.exp(-jnp.abs(x))                      # in (0, 1]
    inv = 1.0 / (1.0 + e)
    sig = jnp.where(x >= 0.0, inv, e * inv)       # numerically stable sigmoid
    # BCEWithLogits element loss: max(x,0) - x*t + log(1 + exp(-|x|))
    loss_elem = jnp.maximum(x, 0.0) - x * t + jnp.log1p(e)

    g = jnp.abs(sig - t)
    bin_idx = jnp.floor(g * (bins - 0.0001)).astype(jnp.int32)

    # Static check: mask only when the last row-tile is partial.
    if n_rows % tm != 0:
        row = pid * tm + jax.lax.broadcasted_iota(jnp.int32, bin_idx.shape, 0)
        valid = row < n_rows
    else:
        valid = None

    # Fused per-bin (count, masked-loss-sum) accumulation.  Sublane-only
    # reduction here; the lane reduction is deferred to the finalize step.
    for i in range(bins):
        m = bin_idx == i
        if valid is not None:
            m = jnp.logical_and(m, valid)
        c_part = jnp.sum(m.astype(jnp.float32), axis=0, keepdims=True)
        s_part = jnp.sum(jnp.where(m, loss_elem, 0.0), axis=0, keepdims=True)
        cnt_sc[pl.ds(i, 1), :] = cnt_sc[pl.ds(i, 1), :] + c_part
        ssum_sc[pl.ds(i, 1), :] = ssum_sc[pl.ds(i, 1), :] + s_part

    @pl.when(pid == pl.num_programs(0) - 1)
    def _finalize():
        has_last = has_last_ref[0]
        n_total = float(n_rows * n_cols)       # N = x.size(0) * x.size(1)
        counts = []
        ssums = []
        for i in range(bins):
            raw = jnp.sum(cnt_sc[pl.ds(i, 1), :])
            c = jnp.where(has_last > 0,
                          alpha * last_ref[i] + (1.0 - alpha) * raw,
                          raw)
            count_ref[i] = c
            counts.append(c)
            ssums.append(jnp.sum(ssum_sc[pl.ds(i, 1), :]))
        nonempty = jnp.zeros((), jnp.float32)
        for c in counts:
            nonempty = nonempty + (c > 0.0).astype(jnp.float32)
        loss = jnp.zeros((), jnp.float32)
        for c, s in zip(counts, ssums):
            gd = jnp.maximum(c * nonempty, 0.0001)
            loss = loss + s * (n_total / gd)     # beta_i * S_i
        loss_ref[0] = loss / n_total


def ghm_loss_pallas(has_last, last_bin_count, x, target, *, bins, alpha, tm=None):
    n_rows, n_cols = x.shape
    itemsize = jnp.dtype(x.dtype).itemsize
    if tm is None:
        # ~4 MiB per input tile; with 2 inputs x 2 pipeline buffers this stays
        # far below the scoped VMEM limit on every generation (incl. v7x 64 MiB).
        rows_by_budget = max(8, (4 << 20) // max(n_cols * itemsize, 1))
        tm = min(_round_up(n_rows, 8), 1024, (rows_by_budget // 8) * 8)
        tm = max(int(tm), 8)

    grid = (pl.cdiv(n_rows, tm),)

    kernel = functools.partial(_ghm_kernel, bins=bins, alpha=alpha,
                               n_rows=n_rows, n_cols=n_cols, tm=tm)

    cost = pl.CostEstimate(
        flops=int((14 + 4 * bins) * n_rows * n_cols),
        transcendentals=int(2 * n_rows * n_cols),
        bytes_accessed=int(2 * n_rows * n_cols * itemsize),
    )

    loss, new_count = pl.pallas_call(
        kernel,
        out_shape=(
            jax.ShapeDtypeStruct((1,), jnp.float32),      # scalar loss
            jax.ShapeDtypeStruct((bins,), jnp.float32),   # updated EMA bin_count
        ),
        grid_spec=pltpu.PrefetchScalarGridSpec(
            num_scalar_prefetch=0,
            grid=grid,
            in_specs=[
                pl.BlockSpec(memory_space=pltpu.SMEM),            # has_last flag
                pl.BlockSpec(memory_space=pltpu.SMEM),            # last bin_count
                pl.BlockSpec((tm, n_cols), lambda i: (i, 0)),     # x row tile
                pl.BlockSpec((tm, n_cols), lambda i: (i, 0)),     # target row tile
            ],
            out_specs=(
                pl.BlockSpec(memory_space=pltpu.SMEM),
                pl.BlockSpec(memory_space=pltpu.SMEM),
            ),
            scratch_shapes=[
                pltpu.VMEM((bins, n_cols), jnp.float32),   # per-bin count partials
                pltpu.VMEM((bins, n_cols), jnp.float32),   # per-bin loss-sum partials
            ],
        ),
        compiler_params=pltpu.CompilerParams(
            dimension_semantics=("arbitrary",)),
        cost_estimate=cost,
    )(has_last, last_bin_count, x, target)
    return loss, new_count


class GHMLossPallas:
    """Stateful wrapper mirroring the PyTorch GHM_Loss module (GHMC variant)."""

    def __init__(self, bins=10, alpha=0.5, tm=None):
        self._bins = bins
        self._alpha = alpha
        self._tm = tm
        self._last_bin_count = None

    def __call__(self, x, target):
        if self._last_bin_count is None:
            has_last = jnp.zeros((1,), jnp.int32)
            last = jnp.zeros((self._bins,), jnp.float32)
        else:
            has_last = jnp.ones((1,), jnp.int32)
            last = self._last_bin_count
        loss, new_count = ghm_loss_pallas(
            has_last, last, x, target,
            bins=self._bins, alpha=self._alpha, tm=self._tm)
        self._last_bin_count = new_count
        return loss[0]


def _reference_ghm(x, target, bins=10, alpha=0.5, last_bin_count=None):
    """Pure-JAX reference of the PyTorch forward (GHMC instantiation)."""
    x = x.astype(jnp.float32)
    target = target.astype(jnp.float32)
    g = jnp.abs(jax.nn.sigmoid(x) - target)
    bin_idx = jnp.floor(g * (bins - 0.0001)).astype(jnp.int32)
    bin_count = jnp.array(
        [jnp.sum(bin_idx == i) for i in range(bins)], jnp.float32)
    n_total = x.shape[0] * x.shape[1]
    if last_bin_count is not None:
        bin_count = alpha * last_bin_count + (1 - alpha) * bin_count
    nonempty = jnp.sum(bin_count > 0).astype(jnp.float32)
    gd = jnp.clip(bin_count * nonempty, min=0.0001)
    beta = n_total / gd
    w = beta[bin_idx]
    loss_elem = jnp.maximum(x, 0.0) - x * target + jnp.log1p(jnp.exp(-jnp.abs(x)))
    return jnp.mean(w * loss_elem), bin_count


if __name__ == "__main__":
    key = jax.random.PRNGKey(0)
    k1, k2, k3, k4, k5, k6 = jax.random.split(key, 6)

    bins, alpha = 10, 0.5

    # --- Test 1: multi-tile grid + masked partial last tile + cross-call EMA ---
    R, C = 200, 128                     # 200 rows, 64-row tiles -> partial tile
    x1 = jax.random.normal(k1, (R, C), dtype=jnp.float32) * 2.0
    t1 = (jax.random.uniform(k2, (R, C)) < 0.5).astype(jnp.float32)
    x2 = jax.random.normal(k3, (R, C), dtype=jnp.float32) * 2.0
    t2 = (jax.random.uniform(k4, (R, C)) < 0.5).astype(jnp.float32)

    mod = GHMLossPallas(bins=bins, alpha=alpha, tm=64)
    loss1 = jax.block_until_ready(mod(x1, t1))
    state1 = mod._last_bin_count
    loss2 = jax.block_until_ready(mod(x2, t2))

    ref1, cnt1 = _reference_ghm(x1, t1, bins=bins, alpha=alpha)
    ref2, _ = _reference_ghm(x2, t2, bins=bins, alpha=alpha, last_bin_count=cnt1)

    assert jnp.isfinite(loss1) and jnp.isfinite(loss2), "non-finite loss"
    assert jnp.allclose(state1, cnt1, rtol=0, atol=0.5), (state1, cnt1)
    assert jnp.allclose(loss1, ref1, rtol=5e-4, atol=1e-5), (loss1, ref1)
    assert jnp.allclose(loss2, ref2, rtol=5e-4, atol=1e-5), (loss2, ref2)

    # --- Test 2: default tile selection, wider class dimension ---
    R2, C2 = 512, 256
    x3 = jax.random.normal(k5, (R2, C2), dtype=jnp.float32)
    t3 = (jax.random.uniform(k6, (R2, C2)) < 0.3).astype(jnp.float32)
    mod2 = GHMLossPallas(bins=bins, alpha=alpha)
    loss3 = jax.block_until_ready(mod2(x3, t3))
    ref3, _ = _reference_ghm(x3, t3, bins=bins, alpha=alpha)
    assert jnp.isfinite(loss3), "non-finite loss"
    assert jnp.allclose(loss3, ref3, rtol=5e-4, atol=1e-5), (loss3, ref3)

    print("KERNEL_OK")
</pallas_src>

<mosaic_0001>
module attributes {stable_mosaic.version = 11 : i64} {
  func.func @_ghm_kernel(%arg0: i32, %arg1: memref<1xi32, #tpu.memory_space<smem>>, %arg2: memref<10xf32, #tpu.memory_space<smem>>, %arg3: memref<64x128xf32, #tpu.memory_space<vmem>>, %arg4: memref<64x128xf32, #tpu.memory_space<vmem>>, %arg5: memref<1xf32, #tpu.memory_space<smem>>, %arg6: memref<10xf32, #tpu.memory_space<smem>>, %arg7: memref<10x128xf32, #tpu.memory_space<vmem>>, %arg8: memref<10x128xf32, #tpu.memory_space<vmem>>) attributes {dimension_semantics = [#tpu.dimension_semantics<arbitrary>], iteration_bounds = array<i64: 4>, scalar_prefetch = 0 : i64, scratch_operands = 2 : i64, tpu.core_type = #tpu.core_type<tc>, window_params = [{transform_indices = @transform_0, window_bounds = array<i64: 1>}, {transform_indices = @transform_1, window_bounds = array<i64: 10>}, {transform_indices = @transform_2, window_bounds = array<i64: 64, 128>}, {transform_indices = @transform_3, window_bounds = array<i64: 64, 128>}, {transform_indices = @transform_4, window_bounds = array<i64: 1>}, {transform_indices = @transform_5, window_bounds = array<i64: 10>}]} {
    %c0_i32 = arith.constant 0 : i32
    %0 = arith.cmpi eq, %arg0, %c0_i32 : i32
    %1 = arith.extui %0 : i1 to i32
    %c0_i32_0 = arith.constant 0 : i32
    %2 = arith.cmpi ne, %1, %c0_i32_0 : i32
    scf.if %2 {
      %cst_113 = arith.constant 0.000000e+00 : f32
      %208 = vector.broadcast %cst_113 : f32 to vector<10x128xf32>
      %c0_114 = arith.constant 0 : index
      %c0_115 = arith.constant 0 : index
      %209 = vector.load %arg7[%c0_114, %c0_115] : memref<10x128xf32, #tpu.memory_space<vmem>>, vector<10x128xf32>
      tpu.vector_store %arg7[%c0_114, %c0_115], %208 {strides = array<i32>} : memref<10x128xf32, #tpu.memory_space<vmem>>, vector<10x128xf32>,
      %cst_116 = arith.constant 0.000000e+00 : f32
      %210 = vector.broadcast %cst_116 : f32 to vector<10x128xf32>
      %c0_117 = arith.constant 0 : index
      %c0_118 = arith.constant 0 : index
      %211 = vector.load %arg8[%c0_117, %c0_118] : memref<10x128xf32, #tpu.memory_space<vmem>>, vector<10x128xf32>
      tpu.vector_store %arg8[%c0_117, %c0_118], %210 {strides = array<i32>} : memref<10x128xf32, #tpu.memory_space<vmem>>, vector<10x128xf32>,
    } else {
    }
    %c0 = arith.constant 0 : index
    %c0_1 = arith.constant 0 : index
    %3 = vector.load %arg3[%c0, %c0_1] : memref<64x128xf32, #tpu.memory_space<vmem>>, vector<64x128xf32>
    %c0_2 = arith.constant 0 : index
    %c0_3 = arith.constant 0 : index
    %4 = vector.load %arg4[%c0_2, %c0_3] : memref<64x128xf32, #tpu.memory_space<vmem>>, vector<64x128xf32>
    %5 = math.absf %3 : vector<64x128xf32>
    %cst = arith.constant 0.000000e+00 : f32
    %6 = vector.broadcast %cst : f32 to vector<64x128xf32>
    %7 = arith.subf %6, %5 : vector<64x128xf32>
    %8 = math.exp %7 : vector<64x128xf32>
    %cst_4 = arith.constant 1.000000e+00 : f32
    %9 = vector.broadcast %cst_4 : f32 to vector<64x128xf32>
    %10 = arith.addf %9, %8 : vector<64x128xf32>
    %cst_5 = arith.constant 1.000000e+00 : f32
    %11 = vector.broadcast %cst_5 : f32 to vector<64x128xf32>
    %12 = arith.divf %11, %10 : vector<64x128xf32>
    %cst_6 = arith.constant 0.000000e+00 : f32
    %13 = vector.broadcast %cst_6 : f32 to vector<64x128xf32>
    %14 = arith.cmpf oge, %3, %13 : vector<64x128xf32>
    %15 = arith.mulf %8, %12 : vector<64x128xf32>
    %16 = arith.select %14, %12, %15 : vector<64x128xi1>, vector<64x128xf32>
    %cst_7 = arith.constant 0.000000e+00 : f32
    %17 = vector.broadcast %cst_7 : f32 to vector<64x128xf32>
    %18 = arith.maximumf %3, %17 : vector<64x128xf32>
    %19 = arith.mulf %3, %4 : vector<64x128xf32>
    %20 = arith.subf %18, %19 : vector<64x128xf32>
    %21 = math.log1p %8 : vector<64x128xf32>
    %22 = arith.addf %20, %21 : vector<64x128xf32>
    %23 = arith.subf %16, %4 : vector<64x128xf32>
    %24 = math.absf %23 : vector<64x128xf32>
    %cst_8 = arith.constant 9.99989986 : f32
    %25 = vector.broadcast %cst_8 : f32 to vector<64x128xf32>
    %26 = arith.mulf %24, %25 : vector<64x128xf32>
    %27 = math.floor %26 : vector<64x128xf32>
    %28 = arith.fptosi %27 : vector<64x128xf32> to vector<64x128xi32>
    %c64_i32 = arith.constant 64 : i32
    %29 = arith.muli %arg0, %c64_i32 : i32
    %30 = tpu.iota {dimensions = array<i32: 0>} : vector<64x128xi32>
    %31 = vector.broadcast %29 : i32 to vector<64x128xi32>
    %32 = arith.addi %31, %30 : vector<64x128xi32>
    %c200_i32 = arith.constant 200 : i32
    %33 = vector.broadcast %c200_i32 : i32 to vector<64x128xi32>
    %34 = arith.cmpi slt, %32, %33 : vector<64x128xi32>
    %c0_i32_9 = arith.constant 0 : i32
    %35 = vector.broadcast %c0_i32_9 : i32 to vector<64x128xi32>
    %36 = arith.cmpi eq, %28, %35 : vector<64x128xi32>
    %37 = arith.andi %36, %34 : vector<64x128xi1>
    %38 = arith.extui %37 : vector<64x128xi1> to vector<64x128xi32>
    %39 = arith.sitofp %38 : vector<64x128xi32> to vector<64x128xf32>
    %cst_10 = arith.constant dense<0.000000e+00> : vector<128xf32>
    %40 = vector.multi_reduction <add>, %39, %cst_10 [0] : vector<64x128xf32> to vector<128xf32>
    %41 = vector.shape_cast %40 : vector<128xf32> to vector<1x128xf32>
    %cst_11 = arith.constant 0.000000e+00 : f32
    %42 = vector.broadcast %cst_11 : f32 to vector<64x128xf32>
    %43 = arith.select %37, %22, %42 : vector<64x128xi1>, vector<64x128xf32>
    %cst_12 = arith.constant dense<0.000000e+00> : vector<128xf32>
    %44 = vector.multi_reduction <add>, %43, %cst_12 [0] : vector<64x128xf32> to vector<128xf32>
    %45 = vector.shape_cast %44 : vector<128xf32> to vector<1x128xf32>
    %c0_13 = arith.constant 0 : index
    %c0_14 = arith.constant 0 : index
    %46 = vector.load %arg7[%c0_13, %c0_14] : memref<10x128xf32, #tpu.memory_space<vmem>>, vector<1x128xf32>
    %47 = arith.addf %46, %41 : vector<1x128xf32>
    %c0_15 = arith.constant 0 : index
    %c0_16 = arith.constant 0 : index
    %48 = vector.load %arg7[%c0_15, %c0_16] : memref<10x128xf32, #tpu.memory_space<vmem>>, vector<1x128xf32>
    tpu.vector_store %arg7[%c0_15, %c0_16], %47 {strides = array<i32>} : memref<10x128xf32, #tpu.memory_space<vmem>>, vector<1x128xf32>,
    %c0_17 = arith.constant 0 : index
    %c0_18 = arith.constant 0 : index
    %49 = vector.load %arg8[%c0_17, %c0_18] : memref<10x128xf32, #tpu.memory_space<vmem>>, vector<1x128xf32>
    %50 = arith.addf %49, %45 : vector<1x128xf32>
    %c0_19 = arith.constant 0 : index
    %c0_20 = arith.constant 0 : index
    %51 = vector.load %arg8[%c0_19, %c0_20] : memref<10x128xf32, #tpu.memory_space<vmem>>, vector<1x128xf32>
    tpu.vector_store %arg8[%c0_19, %c0_20], %50 {strides = array<i32>} : memref<10x128xf32, #tpu.memory_space<vmem>>, vector<1x128xf32>,
    %c1_i32 = arith.constant 1 : i32
    %52 = vector.broadcast %c1_i32 : i32 to vector<64x128xi32>
    %53 = arith.cmpi eq, %28, %52 : vector<64x128xi32>
    %54 = arith.andi %53, %34 : vector<64x128xi1>
    %55 = arith.extui %54 : vector<64x128xi1> to vector<64x128xi32>
    %56 = arith.sitofp %55 : vector<64x128xi32> to vector<64x128xf32>
    %cst_21 = arith.constant dense<0.000000e+00> : vector<128xf32>
    %57 = vector.multi_reduction <add>, %56, %cst_21 [0] : vector<64x128xf32> to vector<128xf32>
    %58 = vector.shape_cast %57 : vector<128xf32> to vector<1x128xf32>
    %cst_22 = arith.constant 0.000000e+00 : f32
    %59 = vector.broadcast %cst_22 : f32 to vector<64x128xf32>
    %60 = arith.select %54, %22, %59 : vector<64x128xi1>, vector<64x128xf32>
    %cst_23 = arith.constant dense<0.000000e+00> : vector<128xf32>
    %61 = vector.multi_reduction <add>, %60, %cst_23 [0] : vector<64x128xf32> to vector<128xf32>
    %62 = vector.shape_cast %61 : vector<128xf32> to vector<1x128xf32>
    %c1 = arith.constant 1 : index
    %c0_24 = arith.constant 0 : index
    %63 = vector.load %arg7[%c1, %c0_24] : memref<10x128xf32, #tpu.memory_space<vmem>>, vector<1x128xf32>
    %64 = arith.addf %63, %58 : vector<1x128xf32>
    %c1_25 = arith.constant 1 : index
    %c0_26 = arith.constant 0 : index
    %65 = vector.load %arg7[%c1_25, %c0_26] : memref<10x128xf32, #tpu.memory_space<vmem>>, vector<1x128xf32>
    tpu.vector_store %arg7[%c1_25, %c0_26], %64 {strides = array<i32>} : memref<10x128xf32, #tpu.memory_space<vmem>>, vector<1x128xf32>,
    %c1_27 = arith.constant 1 : index
    %c0_28 = arith.constant 0 : index
    %66 = vector.load %arg8[%c1_27, %c0_28] : memref<10x128xf32, #tpu.memory_space<vmem>>, vector<1x128xf32>
    %67 = arith.addf %66, %62 : vector<1x128xf32>
    %c1_29 = arith.constant 1 : index
    %c0_30 = arith.constant 0 : index
    %68 = vector.load %arg8[%c1_29, %c0_30] : memref<10x128xf32, #tpu.memory_space<vmem>>, vector<1x128xf32>
    tpu.vector_store %arg8[%c1_29, %c0_30], %67 {strides = array<i32>} : memref<10x128xf32, #tpu.memory_space<vmem>>, vector<1x128xf32>,
    %c2_i32 = arith.constant 2 : i32
    %69 = vector.broadcast %c2_i32 : i32 to vector<64x128xi32>
    %70 = arith.cmpi eq, %28, %69 : vector<64x128xi32>
    %71 = arith.andi %70, %34 : vector<64x128xi1>
    %72 = arith.extui %71 : vector<64x128xi1> to vector<64x128xi32>
    %73 = arith.sitofp %72 : vector<64x128xi32> to vector<64x128xf32>
    %cst_31 = arith.constant dense<0.000000e+00> : vector<128xf32>
    %74 = vector.multi_reduction <add>, %73, %cst_31 [0] : vector<64x128xf32> to vector<128xf32>
    %75 = vector.shape_cast %74 : vector<128xf32> to vector<1x128xf32>
    %cst_32 = arith.constant 0.000000e+00 : f32
    %76 = vector.broadcast %cst_32 : f32 to vector<64x128xf32>
    %77 = arith.select %71, %22, %76 : vector<64x128xi1>, vector<64x128xf32>
    %cst_33 = arith.constant dense<0.000000e+00> : vector<128xf32>
    %78 = vector.multi_reduction <add>, %77, %cst_33 [0] : vector<64x128xf32> to vector<128xf32>
    %79 = vector.shape_cast %78 : vector<128xf32> to vector<1x128xf32>
    %c2 = arith.constant 2 : index
    %c0_34 = arith.constant 0 : index
    %80 = vector.load %arg7[%c2, %c0_34] : memref<10x128xf32, #tpu.memory_space<vmem>>, vector<1x128xf32>
    %81 = arith.addf %80, %75 : vector<1x128xf32>
    %c2_35 = arith.constant 2 : index
    %c0_36 = arith.constant 0 : index
    %82 = vector.load %arg7[%c2_35, %c0_36] : memref<10x128xf32, #tpu.memory_space<vmem>>, vector<1x128xf32>
    tpu.vector_store %arg7[%c2_35, %c0_36], %81 {strides = array<i32>} : memref<10x128xf32, #tpu.memory_space<vmem>>, vector<1x128xf32>,
    %c2_37 = arith.constant 2 : index
    %c0_38 = arith.constant 0 : index
    %83 = vector.load %arg8[%c2_37, %c0_38] : memref<10x128xf32, #tpu.memory_space<vmem>>, vector<1x128xf32>
    %84 = arith.addf %83, %79 : vector<1x128xf32>
    %c2_39 = arith.constant 2 : index
    %c0_40 = arith.constant 0 : index
    %85 = vector.load %arg8[%c2_39, %c0_40] : memref<10x128xf32, #tpu.memory_space<vmem>>, vector<1x128xf32>
    tpu.vector_store %arg8[%c2_39, %c0_40], %84 {strides = array<i32>} : memref<10x128xf32, #tpu.memory_space<vmem>>, vector<1x128xf32>,
    %c3_i32 = arith.constant 3 : i32
    %86 = vector.broadcast %c3_i32 : i32 to vector<64x128xi32>
    %87 = arith.cmpi eq, %28, %86 : vector<64x128xi32>
    %88 = arith.andi %87, %34 : vector<64x128xi1>
    %89 = arith.extui %88 : vector<64x128xi1> to vector<64x128xi32>
    %90 = arith.sitofp %89 : vector<64x128xi32> to vector<64x128xf32>
    %cst_41 = arith.constant dense<0.000000e+00> : vector<128xf32>
    %91 = vector.multi_reduction <add>, %90, %cst_41 [0] : vector<64x128xf32> to vector<128xf32>
    %92 = vector.shape_cast %91 : vector<128xf32> to vector<1x128xf32>
    %cst_42 = arith.constant 0.000000e+00 : f32
    %93 = vector.broadcast %cst_42 : f32 to vector<64x128xf32>
    %94 = arith.select %88, %22, %93 : vector<64x128xi1>, vector<64x128xf32>
    %cst_43 = arith.constant dense<0.000000e+00> : vector<128xf32>
    %95 = vector.multi_reduction <add>, %94, %cst_43 [0] : vector<64x128xf32> to vector<128xf32>
    %96 = vector.shape_cast %95 : vector<128xf32> to vector<1x128xf32>
    %c3 = arith.constant 3 : index
    %c0_44 = arith.constant 0 : index
    %97 = vector.load %arg7[%c3, %c0_44] : memref<10x128xf32, #tpu.memory_space<vmem>>, vector<1x128xf32>
    %98 = arith.addf %97, %92 : vector<1x128xf32>
    %c3_45 = arith.constant 3 : index
    %c0_46 = arith.constant 0 : index
    %99 = vector.load %arg7[%c3_45, %c0_46] : memref<10x128xf32, #tpu.memory_space<vmem>>, vector<1x128xf32>
    tpu.vector_store %arg7[%c3_45, %c0_46], %98 {strides = array<i32>} : memref<10x128xf32, #tpu.memory_space<vmem>>, vector<1x128xf32>,
    %c3_47 = arith.constant 3 : index
    %c0_48 = arith.constant 0 : index
    %100 = vector.load %arg8[%c3_47, %c0_48] : memref<10x128xf32, #tpu.memory_space<vmem>>, vector<1x128xf32>
    %101 = arith.addf %100, %96 : vector<1x128xf32>
    %c3_49 = arith.constant 3 : index
    %c0_50 = arith.constant 0 : index
    %102 = vector.load %arg8[%c3_49, %c0_50] : memref<10x128xf32, #tpu.memory_space<vmem>>, vector<1x128xf32>
    tpu.vector_store %arg8[%c3_49, %c0_50], %101 {strides = array<i32>} : memref<10x128xf32, #tpu.memory_space<vmem>>, vector<1x128xf32>,
    %c4_i32 = arith.constant 4 : i32
    %103 = vector.broadcast %c4_i32 : i32 to vector<64x128xi32>
    %104 = arith.cmpi eq, %28, %103 : vector<64x128xi32>
    %105 = arith.andi %104, %34 : vector<64x128xi1>
    %106 = arith.extui %105 : vector<64x128xi1> to vector<64x128xi32>
    %107 = arith.sitofp %106 : vector<64x128xi32> to vector<64x128xf32>
    %cst_51 = arith.constant dense<0.000000e+00> : vector<128xf32>
    %108 = vector.multi_reduction <add>, %107, %cst_51 [0] : vector<64x128xf32> to vector<128xf32>
    %109 = vector.shape_cast %108 : vector<128xf32> to vector<1x128xf32>
    %cst_52 = arith.constant 0.000000e+00 : f32
    %110 = vector.broadcast %cst_52 : f32 to vector<64x128xf32>
    %111 = arith.select %105, %22, %110 : vector<64x128xi1>, vector<64x128xf32>
    %cst_53 = arith.constant dense<0.000000e+00> : vector<128xf32>
    %112 = vector.multi_reduction <add>, %111, %cst_53 [0] : vector<64x128xf32> to vector<128xf32>
    %113 = vector.shape_cast %112 : vector<128xf32> to vector<1x128xf32>
    %c4 = arith.constant 4 : index
    %c0_54 = arith.constant 0 : index
    %114 = vector.load %arg7[%c4, %c0_54] : memref<10x128xf32, #tpu.memory_space<vmem>>, vector<1x128xf32>
    %115 = arith.addf %114, %109 : vector<1x128xf32>
    %c4_55 = arith.constant 4 : index
    %c0_56 = arith.constant 0 : index
    %116 = vector.load %arg7[%c4_55, %c0_56] : memref<10x128xf32, #tpu.memory_space<vmem>>, vector<1x128xf32>
    tpu.vector_store %arg7[%c4_55, %c0_56], %115 {strides = array<i32>} : memref<10x128xf32, #tpu.memory_space<vmem>>, vector<1x128xf32>,
    %c4_57 = arith.constant 4 : index
    %c0_58 = arith.constant 0 : index
    %117 = vector.load %arg8[%c4_57, %c0_58] : memref<10x128xf32, #tpu.memory_space<vmem>>, vector<1x128xf32>
    %118 = arith.addf %117, %113 : vector<1x128xf32>
    %c4_59 = arith.constant 4 : index
    %c0_60 = arith.constant 0 : index
    %119 = vector.load %arg8[%c4_59, %c0_60] : memref<10x128xf32, #tpu.memory_space<vmem>>, vector<1x128xf32>
    tpu.vector_store %arg8[%c4_59, %c0_60], %118 {strides = array<i32>} : memref<10x128xf32, #tpu.memory_space<vmem>>, vector<1x128xf32>,
    %c5_i32 = arith.constant 5 : i32
    %120 = vector.broadcast %c5_i32 : i32 to vector<64x128xi32>
    %121 = arith.cmpi eq, %28, %120 : vector<64x128xi32>
    %122 = arith.andi %121, %34 : vector<64x128xi1>
    %123 = arith.extui %122 : vector<64x128xi1> to vector<64x128xi32>
    %124 = arith.sitofp %123 : vector<64x128xi32> to vector<64x128xf32>
    %cst_61 = arith.constant dense<0.000000e+00> : vector<128xf32>
    %125 = vector.multi_reduction <add>, %124, %cst_61 [0] : vector<64x128xf32> to vector<128xf32>
    %126 = vector.shape_cast %125 : vector<128xf32> to vector<1x128xf32>
    %cst_62 = arith.constant 0.000000e+00 : f32
    %127 = vector.broadcast %cst_62 : f32 to vector<64x128xf32>
    %128 = arith.select %122, %22, %127 : vector<64x128xi1>, vector<64x128xf32>
    %cst_63 = arith.constant dense<0.000000e+00> : vector<128xf32>
    %129 = vector.multi_reduction <add>, %128, %cst_63 [0] : vector<64x128xf32> to vector<128xf32>
    %130 = vector.shape_cast %129 : vector<128xf32> to vector<1x128xf32>
    %c5 = arith.constant 5 : index
    %c0_64 = arith.constant 0 : index
    %131 = vector.load %arg7[%c5, %c0_64] : memref<10x128xf32, #tpu.memory_space<vmem>>, vector<1x128xf32>
    %132 = arith.addf %131, %126 : vector<1x128xf32>
    %c5_65 = arith.constant 5 : index
    %c0_66 = arith.constant 0 : index
    %133 = vector.load %arg7[%c5_65, %c0_66] : memref<10x128xf32, #tpu.memory_space<vmem>>, vector<1x128xf32>
    tpu.vector_store %arg7[%c5_65, %c0_66], %132 {strides = array<i32>} : memref<10x128xf32, #tpu.memory_space<vmem>>, vector<1x128xf32>,
    %c5_67 = arith.constant 5 : index
    %c0_68 = arith.constant 0 : index
    %134 = vector.load %arg8[%c5_67, %c0_68] : memref<10x128xf32, #tpu.memory_space<vmem>>, vector<1x128xf32>
    %135 = arith.addf %134, %130 : vector<1x128xf32>
    %c5_69 = arith.constant 5 : index
    %c0_70 = arith.constant 0 : index
    %136 = vector.load %arg8[%c5_69, %c0_70] : memref<10x128xf32, #tpu.memory_space<vmem>>, vector<1x128xf32>
    tpu.vector_store %arg8[%c5_69, %c0_70], %135 {strides = array<i32>} : memref<10x128xf32, #tpu.memory_space<vmem>>, vector<1x128xf32>,
    %c6_i32 = arith.constant 6 : i32
    %137 = vector.broadcast %c6_i32 : i32 to vector<64x128xi32>
    %138 = arith.cmpi eq, %28, %137 : vector<64x128xi32>
    %139 = arith.andi %138, %34 : vector<64x128xi1>
    %140 = arith.extui %139 : vector<64x128xi1> to vector<64x128xi32>
    %141 = arith.sitofp %140 : vector<64x128xi32> to vector<64x128xf32>
    %cst_71 = arith.constant dense<0.000000e+00> : vector<128xf32>
    %142 = vector.multi_reduction <add>, %141, %cst_71 [0] : vector<64x128xf32> to vector<128xf32>
    %143 = vector.shape_cast %142 : vector<128xf32> to vector<1x128xf32>
    %cst_72 = arith.constant 0.000000e+00 : f32
    %144 = vector.broadcast %cst_72 : f32 to vector<64x128xf32>
    %145 = arith.select %139, %22, %144 : vector<64x128xi1>, vector<64x128xf32>
    %cst_73 = arith.constant dense<0.000000e+00> : vector<128xf32>
    %146 = vector.multi_reduction <add>, %145, %cst_73 [0] : vector<64x128xf32> to vector<128xf32>
    %147 = vector.shape_cast %146 : vector<128xf32> to vector<1x128xf32>
    %c6 = arith.constant 6 : index
    %c0_74 = arith.constant 0 : index
    %148 = vector.load %arg7[%c6, %c0_74] : memref<10x128xf32, #tpu.memory_space<vmem>>, vector<1x128xf32>
    %149 = arith.addf %148, %143 : vector<1x128xf32>
    %c6_75 = arith.constant 6 : index
    %c0_76 = arith.constant 0 : index
    %150 = vector.load %arg7[%c6_75, %c0_76] : memref<10x128xf32, #tpu.memory_space<vmem>>, vector<1x128xf32>
    tpu.vector_store %arg7[%c6_75, %c0_76], %149 {strides = array<i32>} : memref<10x128xf32, #tpu.memory_space<vmem>>, vector<1x128xf32>,
    %c6_77 = arith.constant 6 : index
    %c0_78 = arith.constant 0 : index
    %151 = vector.load %arg8[%c6_77, %c0_78] : memref<10x128xf32, #tpu.memory_space<vmem>>, vector<1x128xf32>
    %152 = arith.addf %151, %147 : vector<1x128xf32>
    %c6_79 = arith.constant 6 : index
    %c0_80 = arith.constant 0 : index
    %153 = vector.load %arg8[%c6_79, %c0_80] : memref<10x128xf32, #tpu.memory_space<vmem>>, vector<1x128xf32>
    tpu.vector_store %arg8[%c6_79, %c0_80], %152 {strides = array<i32>} : memref<10x128xf32, #tpu.memory_space<vmem>>, vector<1x128xf32>,
    %c7_i32 = arith.constant 7 : i32
    %154 = vector.broadcast %c7_i32 : i32 to vector<64x128xi32>
    %155 = arith.cmpi eq, %28, %154 : vector<64x128xi32>
    %156 = arith.andi %155, %34 : vector<64x128xi1>
    %157 = arith.extui %156 : vector<64x128xi1> to vector<64x128xi32>
    %158 = arith.sitofp %157 : vector<64x128xi32> to vector<64x128xf32>
    %cst_81 = arith.constant dense<0.000000e+00> : vector<128xf32>
    %159 = vector.multi_reduction <add>, %158, %cst_81 [0] : vector<64x128xf32> to vector<128xf32>
    %160 = vector.shape_cast %159 : vector<128xf32> to vector<1x128xf32>
    %cst_82 = arith.constant 0.000000e+00 : f32
    %161 = vector.broadcast %cst_82 : f32 to vector<64x128xf32>
    %162 = arith.select %156, %22, %161 : vector<64x128xi1>, vector<64x128xf32>
    %cst_83 = arith.constant dense<0.000000e+00> : vector<128xf32>
    %163 = vector.multi_reduction <add>, %162, %cst_83 [0] : vector<64x128xf32> to vector<128xf32>
    %164 = vector.shape_cast %163 : vector<128xf32> to vector<1x128xf32>
    %c7 = arith.constant 7 : index
    %c0_84 = arith.constant 0 : index
    %165 = vector.load %arg7[%c7, %c0_84] : memref<10x128xf32, #tpu.memory_space<vmem>>, vector<1x128xf32>
    %166 = arith.addf %165, %160 : vector<1x128xf32>
    %c7_85 = arith.constant 7 : index
    %c0_86 = arith.constant 0 : index
    %167 = vector.load %arg7[%c7_85, %c0_86] : memref<10x128xf32, #tpu.memory_space<vmem>>, vector<1x128xf32>
    tpu.vector_store %arg7[%c7_85, %c0_86], %166 {strides = array<i32>} : memref<10x128xf32, #tpu.memory_space<vmem>>, vector<1x128xf32>,
    %c7_87 = arith.constant 7 : index
    %c0_88 = arith.constant 0 : index
    %168 = vector.load %arg8[%c7_87, %c0_88] : memref<10x128xf32, #tpu.memory_space<vmem>>, vector<1x128xf32>
    %169 = arith.addf %168, %164 : vector<1x128xf32>
    %c7_89 = arith.constant 7 : index
    %c0_90 = arith.constant 0 : index
    %170 = vector.load %arg8[%c7_89, %c0_90] : memref<10x128xf32, #tpu.memory_space<vmem>>, vector<1x128xf32>
    tpu.vector_store %arg8[%c7_89, %c0_90], %169 {strides = array<i32>} : memref<10x128xf32, #tpu.memory_space<vmem>>, vector<1x128xf32>,
    %c8_i32 = arith.constant 8 : i32
    %171 = vector.broadcast %c8_i32 : i32 to vector<64x128xi32>
    %172 = arith.cmpi eq, %28, %171 : vector<64x128xi32>
    %173 = arith.andi %172, %34 : vector<64x128xi1>
    %174 = arith.extui %173 : vector<64x128xi1> to vector<64x128xi32>
    %175 = arith.sitofp %174 : vector<64x128xi32> to vector<64x128xf32>
    %cst_91 = arith.constant dense<0.000000e+00> : vector<128xf32>
    %176 = vector.multi_reduction <add>, %175, %cst_91 [0] : vector<64x128xf32> to vector<128xf32>
    %177 = vector.shape_cast %176 : vector<128xf32> to vector<1x128xf32>
    %cst_92 = arith.constant 0.000000e+00 : f32
    %178 = vector.broadcast %cst_92 : f32 to vector<64x128xf32>
    %179 = arith.select %173, %22, %178 : vector<64x128xi1>, vector<64x128xf32>
    %cst_93 = arith.constant dense<0.000000e+00> : vector<128xf32>
    %180 = vector.multi_reduction <add>, %179, %cst_93 [0] : vector<64x128xf32> to vector<128xf32>
    %181 = vector.shape_cast %180 : vector<128xf32> to vector<1x128xf32>
    %c8 = arith.constant 8 : index
    %c0_94 = arith.constant 0 : index
    %182 = vector.load %arg7[%c8, %c0_94] : memref<10x128xf32, #tpu.memory_space<vmem>>, vector<1x128xf32>
    %183 = arith.addf %182, %177 : vector<1x128xf32>
    %c8_95 = arith.constant 8 : index
    %c0_96 = arith.constant 0 : index
    %184 = vector.load %arg7[%c8_95, %c0_96] : memref<10x128xf32, #tpu.memory_space<vmem>>, vector<1x128xf32>
    tpu.vector_store %arg7[%c8_95, %c0_96], %183 {strides = array<i32>} : memref<10x128xf32, #tpu.memory_space<vmem>>, vector<1x128xf32>,
    %c8_97 = arith.constant 8 : index
    %c0_98 = arith.constant 0 : index
    %185 = vector.load %arg8[%c8_97, %c0_98] : memref<10x128xf32, #tpu.memory_space<vmem>>, vector<1x128xf32>
    %186 = arith.addf %185, %181 : vector<1x128xf32>
    %c8_99 = arith.constant 8 : index
    %c0_100 = arith.constant 0 : index
    %187 = vector.load %arg8[%c8_99, %c0_100] : memref<10x128xf32, #tpu.memory_space<vmem>>, vector<1x128xf32>
    tpu.vector_store %arg8[%c8_99, %c0_100], %186 {strides = array<i32>} : memref<10x128xf32, #tpu.memory_space<vmem>>, vector<1x128xf32>,
    %c9_i32 = arith.constant 9 : i32
    %188 = vector.broadcast %c9_i32 : i32 to vector<64x128xi32>
    %189 = arith.cmpi eq, %28, %188 : vector<64x128xi32>
    %190 = arith.andi %189, %34 : vector<64x128xi1>
    %191 = arith.extui %190 : vector<64x128xi1> to vector<64x128xi32>
    %192 = arith.sitofp %191 : vector<64x128xi32> to vector<64x128xf32>
    %cst_101 = arith.constant dense<0.000000e+00> : vector<128xf32>
    %193 = vector.multi_reduction <add>, %192, %cst_101 [0] : vector<64x128xf32> to vector<128xf32>
    %194 = vector.shape_cast %193 : vector<128xf32> to vector<1x128xf32>
    %cst_102 = arith.constant 0.000000e+00 : f32
    %195 = vector.broadcast %cst_102 : f32 to vector<64x128xf32>
    %196 = arith.select %190, %22, %195 : vector<64x128xi1>, vector<64x128xf32>
    %cst_103 = arith.constant dense<0.000000e+00> : vector<128xf32>
    %197 = vector.multi_reduction <add>, %196, %cst_103 [0] : vector<64x128xf32> to vector<128xf32>
    %198 = vector.shape_cast %197 : vector<128xf32> to vector<1x128xf32>
    %c9 = arith.constant 9 : index
    %c0_104 = arith.constant 0 : index
    %199 = vector.load %arg7[%c9, %c0_104] : memref<10x128xf32, #tpu.memory_space<vmem>>, vector<1x128xf32>
    %200 = arith.addf %199, %194 : vector<1x128xf32>
    %c9_105 = arith.constant 9 : index
    %c0_106 = arith.constant 0 : index
    %201 = vector.load %arg7[%c9_105, %c0_106] : memref<10x128xf32, #tpu.memory_space<vmem>>, vector<1x128xf32>
    tpu.vector_store %arg7[%c9_105, %c0_106], %200 {strides = array<i32>} : memref<10x128xf32, #tpu.memory_space<vmem>>, vector<1x128xf32>,
    %c9_107 = arith.constant 9 : index
    %c0_108 = arith.constant 0 : index
    %202 = vector.load %arg8[%c9_107, %c0_108] : memref<10x128xf32, #tpu.memory_space<vmem>>, vector<1x128xf32>
    %203 = arith.addf %202, %198 : vector<1x128xf32>
    %c9_109 = arith.constant 9 : index
    %c0_110 = arith.constant 0 : index
    %204 = vector.load %arg8[%c9_109, %c0_110] : memref<10x128xf32, #tpu.memory_space<vmem>>, vector<1x128xf32>
    tpu.vector_store %arg8[%c9_109, %c0_110], %203 {strides = array<i32>} : memref<10x128xf32, #tpu.memory_space<vmem>>, vector<1x128xf32>,
    %c3_i32_111 = arith.constant 3 : i32
    %205 = arith.cmpi eq, %arg0, %c3_i32_111 : i32
    %206 = arith.extui %205 : i1 to i32
    %c0_i32_112 = arith.constant 0 : i32
    %207 = arith.cmpi ne, %206, %c0_i32_112 : i32
    scf.if %207 {
      %c0_113 = arith.constant 0 : index
      %208 = memref.load %arg1[%c0_113] : memref<1xi32, #tpu.memory_space<smem>>
      %c0_114 = arith.constant 0 : index
      %c0_115 = arith.constant 0 : index
      %209 = vector.load %arg7[%c0_114, %c0_115] : memref<10x128xf32, #tpu.memory_space<vmem>>, vector<1x128xf32>
      %210 = vector.shape_cast %209 : vector<1x128xf32> to vector<1x1x128xf32>
      %cst_116 = arith.constant dense<0.000000e+00> : vector<1xf32>
      %211 = vector.multi_reduction <add>, %210, %cst_116 [1, 2] : vector<1x1x128xf32> to vector<1xf32>
      %212 = vector.shape_cast %211 : vector<1xf32> to vector<1x1x1xf32>
      %213 = vector.extract %212[0, 0, 0] : f32 from vector<1x1x1xf32>
      %c0_i32_117 = arith.constant 0 : i32
      %214 = arith.cmpi sgt, %208, %c0_i32_117 : i32
      %c0_118 = arith.constant 0 : index
      %215 = memref.load %arg2[%c0_118] : memref<10xf32, #tpu.memory_space<smem>>
      %cst_119 = arith.constant 5.000000e-01 : f32
      %216 = arith.mulf %cst_119, %215 : f32
      %cst_120 = arith.constant 5.000000e-01 : f32
      %217 = arith.mulf %cst_120, %213 : f32
      %218 = arith.addf %216, %217 : f32
      %219 = arith.select %214, %218, %213 : f32
      %c0_121 = arith.constant 0 : index
      %220 = memref.load %arg6[%c0_121] : memref<10xf32, #tpu.memory_space<smem>>
      memref.store %219, %arg6[%c0_121] : memref<10xf32, #tpu.memory_space<smem>>
      %c0_122 = arith.constant 0 : index
      %c0_123 = arith.constant 0 : index
      %221 = vector.load %arg8[%c0_122, %c0_123] : memref<10x128xf32, #tpu.memory_space<vmem>>, vector<1x128xf32>
      %222 = vector.shape_cast %221 : vector<1x128xf32> to vector<1x1x128xf32>
      %cst_124 = arith.constant dense<0.000000e+00> : vector<1xf32>
      %223 = vector.multi_reduction <add>, %222, %cst_124 [1, 2] : vector<1x1x128xf32> to vector<1xf32>
      %224 = vector.shape_cast %223 : vector<1xf32> to vector<1x1x1xf32>
      %225 = vector.extract %224[0, 0, 0] : f32 from vector<1x1x1xf32>
      %c1_125 = arith.constant 1 : index
      %c0_126 = arith.constant 0 : index
      %226 = vector.load %arg7[%c1_125, %c0_126] : memref<10x128xf32, #tpu.memory_space<vmem>>, vector<1x128xf32>
      %227 = vector.shape_cast %226 : vector<1x128xf32> to vector<1x1x128xf32>
      %cst_127 = arith.constant dense<0.000000e+00> : vector<1xf32>
      %228 = vector.multi_reduction <add>, %227, %cst_127 [1, 2] : vector<1x1x128xf32> to vector<1xf32>
      %229 = vector.shape_cast %228 : vector<1xf32> to vector<1x1x1xf32>
      %230 = vector.extract %229[0, 0, 0] : f32 from vector<1x1x1xf32>
      %c0_i32_128 = arith.constant 0 : i32
      %231 = arith.cmpi sgt, %208, %c0_i32_128 : i32
      %c1_129 = arith.constant 1 : index
      %232 = memref.load %arg2[%c1_129] : memref<10xf32, #tpu.memory_space<smem>>
      %cst_130 = arith.constant 5.000000e-01 : f32
      %233 = arith.mulf %cst_130, %232 : f32
      %cst_131 = arith.constant 5.000000e-01 : f32
      %234 = arith.mulf %cst_131, %230 : f32
      %235 = arith.addf %233, %234 : f32
      %236 = arith.select %231, %235, %230 : f32
      %c1_132 = arith.constant 1 : index
      %237 = memref.load %arg6[%c1_132] : memref<10xf32, #tpu.memory_space<smem>>
      memref.store %236, %arg6[%c1_132] : memref<10xf32, #tpu.memory_space<smem>>
      %c1_133 = arith.constant 1 : index
      %c0_134 = arith.constant 0 : index
      %238 = vector.load %arg8[%c1_133, %c0_134] : memref<10x128xf32, #tpu.memory_space<vmem>>, vector<1x128xf32>
      %239 = vector.shape_cast %238 : vector<1x128xf32> to vector<1x1x128xf32>
      %cst_135 = arith.constant dense<0.000000e+00> : vector<1xf32>
      %240 = vector.multi_reduction <add>, %239, %cst_135 [1, 2] : vector<1x1x128xf32> to vector<1xf32>
      %241 = vector.shape_cast %240 : vector<1xf32> to vector<1x1x1xf32>
      %242 = vector.extract %241[0, 0, 0] : f32 from vector<1x1x1xf32>
      %c2_136 = arith.constant 2 : index
      %c0_137 = arith.constant 0 : index
      %243 = vector.load %arg7[%c2_136, %c0_137] : memref<10x128xf32, #tpu.memory_space<vmem>>, vector<1x128xf32>
      %244 = vector.shape_cast %243 : vector<1x128xf32> to vector<1x1x128xf32>
      %cst_138 = arith.constant dense<0.000000e+00> : vector<1xf32>
      %245 = vector.multi_reduction <add>, %244, %cst_138 [1, 2] : vector<1x1x128xf32> to vector<1xf32>
      %246 = vector.shape_cast %245 : vector<1xf32> to vector<1x1x1xf32>
      %247 = vector.extract %246[0, 0, 0] : f32 from vector<1x1x1xf32>
      %c0_i32_139 = arith.constant 0 : i32
      %248 = arith.cmpi sgt, %208, %c0_i32_139 : i32
      %c2_140 = arith.constant 2 : index
      %249 = memref.load %arg2[%c2_140] : memref<10xf32, #tpu.memory_space<smem>>
      %cst_141 = arith.constant 5.000000e-01 : f32
      %250 = arith.mulf %cst_141, %249 : f32
      %cst_142 = arith.constant 5.000000e-01 : f32
      %251 = arith.mulf %cst_142, %247 : f32
      %252 = arith.addf %250, %251 : f32
      %253 = arith.select %248, %252, %247 : f32
      %c2_143 = arith.constant 2 : index
      %254 = memref.load %arg6[%c2_143] : memref<10xf32, #tpu.memory_space<smem>>
      memref.store %253, %arg6[%c2_143] : memref<10xf32, #tpu.memory_space<smem>>
      %c2_144 = arith.constant 2 : index
      %c0_145 = arith.constant 0 : index
      %255 = vector.load %arg8[%c2_144, %c0_145] : memref<10x128xf32, #tpu.memory_space<vmem>>, vector<1x128xf32>
      %256 = vector.shape_cast %255 : vector<1x128xf32> to vector<1x1x128xf32>
      %cst_146 = arith.constant dense<0.000000e+00> : vector<1xf32>
      %257 = vector.multi_reduction <add>, %256, %cst_146 [1, 2] : vector<1x1x128xf32> to vector<1xf32>
      %258 = vector.shape_cast %257 : vector<1xf32> to vector<1x1x1xf32>
      %259 = vector.extract %258[0, 0, 0] : f32 from vector<1x1x1xf32>
      %c3_147 = arith.constant 3 : index
      %c0_148 = arith.constant 0 : index
      %260 = vector.load %arg7[%c3_147, %c0_148] : memref<10x128xf32, #tpu.memory_space<vmem>>, vector<1x128xf32>
      %261 = vector.shape_cast %260 : vector<1x128xf32> to vector<1x1x128xf32>
      %cst_149 = arith.constant dense<0.000000e+00> : vector<1xf32>
      %262 = vector.multi_reduction <add>, %261, %cst_149 [1, 2] : vector<1x1x128xf32> to vector<1xf32>
      %263 = vector.shape_cast %262 : vector<1xf32> to vector<1x1x1xf32>
      %264 = vector.extract %263[0, 0, 0] : f32 from vector<1x1x1xf32>
      %c0_i32_150 = arith.constant 0 : i32
      %265 = arith.cmpi sgt, %208, %c0_i32_150 : i32
      %c3_151 = arith.constant 3 : index
      %266 = memref.load %arg2[%c3_151] : memref<10xf32, #tpu.memory_space<smem>>
      %cst_152 = arith.constant 5.000000e-01 : f32
      %267 = arith.mulf %cst_152, %266 : f32
      %cst_153 = arith.constant 5.000000e-01 : f32
      %268 = arith.mulf %cst_153, %264 : f32
      %269 = arith.addf %267, %268 : f32
      %270 = arith.select %265, %269, %264 : f32
      %c3_154 = arith.constant 3 : index
      %271 = memref.load %arg6[%c3_154] : memref<10xf32, #tpu.memory_space<smem>>
      memref.store %270, %arg6[%c3_154] : memref<10xf32, #tpu.memory_space<smem>>
      %c3_155 = arith.constant 3 : index
      %c0_156 = arith.constant 0 : index
      %272 = vector.load %arg8[%c3_155, %c0_156] : memref<10x128xf32, #tpu.memory_space<vmem>>, vector<1x128xf32>
      %273 = vector.shape_cast %272 : vector<1x128xf32> to vector<1x1x128xf32>
      %cst_157 = arith.constant dense<0.000000e+00> : vector<1xf32>
      %274 = vector.multi_reduction <add>, %273, %cst_157 [1, 2] : vector<1x1x128xf32> to vector<1xf32>
      %275 = vector.shape_cast %274 : vector<1xf32> to vector<1x1x1xf32>
      %276 = vector.extract %275[0, 0, 0] : f32 from vector<1x1x1xf32>
      %c4_158 = arith.constant 4 : index
      %c0_159 = arith.constant 0 : index
      %277 = vector.load %arg7[%c4_158, %c0_159] : memref<10x128xf32, #tpu.memory_space<vmem>>, vector<1x128xf32>
      %278 = vector.shape_cast %277 : vector<1x128xf32> to vector<1x1x128xf32>
      %cst_160 = arith.constant dense<0.000000e+00> : vector<1xf32>
      %279 = vector.multi_reduction <add>, %278, %cst_160 [1, 2] : vector<1x1x128xf32> to vector<1xf32>
      %280 = vector.shape_cast %279 : vector<1xf32> to vector<1x1x1xf32>
      %281 = vector.extract %280[0, 0, 0] : f32 from vector<1x1x1xf32>
      %c0_i32_161 = arith.constant 0 : i32
      %282 = arith.cmpi sgt, %208, %c0_i32_161 : i32
      %c4_162 = arith.constant 4 : index
      %283 = memref.load %arg2[%c4_162] : memref<10xf32, #tpu.memory_space<smem>>
      %cst_163 = arith.constant 5.000000e-01 : f32
      %284 = arith.mulf %cst_163, %283 : f32
      %cst_164 = arith.constant 5.000000e-01 : f32
      %285 = arith.mulf %cst_164, %281 : f32
      %286 = arith.addf %284, %285 : f32
      %287 = arith.select %282, %286, %281 : f32
      %c4_165 = arith.constant 4 : index
      %288 = memref.load %arg6[%c4_165] : memref<10xf32, #tpu.memory_space<smem>>
      memref.store %287, %arg6[%c4_165] : memref<10xf32, #tpu.memory_space<smem>>
      %c4_166 = arith.constant 4 : index
      %c0_167 = arith.constant 0 : index
      %289 = vector.load %arg8[%c4_166, %c0_167] : memref<10x128xf32, #tpu.memory_space<vmem>>, vector<1x128xf32>
      %290 = vector.shape_cast %289 : vector<1x128xf32> to vector<1x1x128xf32>
      %cst_168 = arith.constant dense<0.000000e+00> : vector<1xf32>
      %291 = vector.multi_reduction <add>, %290, %cst_168 [1, 2] : vector<1x1x128xf32> to vector<1xf32>
      %292 = vector.shape_cast %291 : vector<1xf32> to vector<1x1x1xf32>
      %293 = vector.extract %292[0, 0, 0] : f32 from vector<1x1x1xf32>
      %c5_169 = arith.constant 5 : index
      %c0_170 = arith.constant 0 : index
      %294 = vector.load %arg7[%c5_169, %c0_170] : memref<10x128xf32, #tpu.memory_space<vmem>>, vector<1x128xf32>
      %295 = vector.shape_cast %294 : vector<1x128xf32> to vector<1x1x128xf32>
      %cst_171 = arith.constant dense<0.000000e+00> : vector<1xf32>
      %296 = vector.multi_reduction <add>, %295, %cst_171 [1, 2] : vector<1x1x128xf32> to vector<1xf32>
      %297 = vector.shape_cast %296 : vector<1xf32> to vector<1x1x1xf32>
      %298 = vector.extract %297[0, 0, 0] : f32 from vector<1x1x1xf32>
      %c0_i32_172 = arith.constant 0 : i32
      %299 = arith.cmpi sgt, %208, %c0_i32_172 : i32
      %c5_173 = arith.constant 5 : index
      %300 = memref.load %arg2[%c5_173] : memref<10xf32, #tpu.memory_space<smem>>
      %cst_174 = arith.constant 5.000000e-01 : f32
      %301 = arith.mulf %cst_174, %300 : f32
      %cst_175 = arith.constant 5.000000e-01 : f32
      %302 = arith.mulf %cst_175, %298 : f32
      %303 = arith.addf %301, %302 : f32
      %304 = arith.select %299, %303, %298 : f32
      %c5_176 = arith.constant 5 : index
      %305 = memref.load %arg6[%c5_176] : memref<10xf32, #tpu.memory_space<smem>>
      memref.store %304, %arg6[%c5_176] : memref<10xf32, #tpu.memory_space<smem>>
      %c5_177 = arith.constant 5 : index
      %c0_178 = arith.constant 0 : index
      %306 = vector.load %arg8[%c5_177, %c0_178] : memref<10x128xf32, #tpu.memory_space<vmem>>, vector<1x128xf32>
      %307 = vector.shape_cast %306 : vector<1x128xf32> to vector<1x1x128xf32>
      %cst_179 = arith.constant dense<0.000000e+00> : vector<1xf32>
      %308 = vector.multi_reduction <add>, %307, %cst_179 [1, 2] : vector<1x1x128xf32> to vector<1xf32>
      %309 = vector.shape_cast %308 : vector<1xf32> to vector<1x1x1xf32>
      %310 = vector.extract %309[0, 0, 0] : f32 from vector<1x1x1xf32>
      %c6_180 = arith.constant 6 : index
      %c0_181 = arith.constant 0 : index
      %311 = vector.load %arg7[%c6_180, %c0_181] : memref<10x128xf32, #tpu.memory_space<vmem>>, vector<1x128xf32>
      %312 = vector.shape_cast %311 : vector<1x128xf32> to vector<1x1x128xf32>
      %cst_182 = arith.constant dense<0.000000e+00> : vector<1xf32>
      %313 = vector.multi_reduction <add>, %312, %cst_182 [1, 2] : vector<1x1x128xf32> to vector<1xf32>
      %314 = vector.shape_cast %313 : vector<1xf32> to vector<1x1x1xf32>
      %315 = vector.extract %314[0, 0, 0] : f32 from vector<1x1x1xf32>
      %c0_i32_183 = arith.constant 0 : i32
      %316 = arith.cmpi sgt, %208, %c0_i32_183 : i32
      %c6_184 = arith.constant 6 : index
      %317 = memref.load %arg2[%c6_184] : memref<10xf32, #tpu.memory_space<smem>>
      %cst_185 = arith.constant 5.000000e-01 : f32
      %318 = arith.mulf %cst_185, %317 : f32
      %cst_186 = arith.constant 5.000000e-01 : f32
      %319 = arith.mulf %cst_186, %315 : f32
      %320 = arith.addf %318, %319 : f32
      %321 = arith.select %316, %320, %315 : f32
      %c6_187 = arith.constant 6 : index
      %322 = memref.load %arg6[%c6_187] : memref<10xf32, #tpu.memory_space<smem>>
      memref.store %321, %arg6[%c6_187] : memref<10xf32, #tpu.memory_space<smem>>
      %c6_188 = arith.constant 6 : index
      %c0_189 = arith.constant 0 : index
      %323 = vector.load %arg8[%c6_188, %c0_189] : memref<10x128xf32, #tpu.memory_space<vmem>>, vector<1x128xf32>
      %324 = vector.shape_cast %323 : vector<1x128xf32> to vector<1x1x128xf32>
      %cst_190 = arith.constant dense<0.000000e+00> : vector<1xf32>
      %325 = vector.multi_reduction <add>, %324, %cst_190 [1, 2] : vector<1x1x128xf32> to vector<1xf32>
      %326 = vector.shape_cast %325 : vector<1xf32> to vector<1x1x1xf32>
      %327 = vector.extract %326[0, 0, 0] : f32 from vector<1x1x1xf32>
      %c7_191 = arith.constant 7 : index
      %c0_192 = arith.constant 0 : index
      %328 = vector.load %arg7[%c7_191, %c0_192] : memref<10x128xf32, #tpu.memory_space<vmem>>, vector<1x128xf32>
      %329 = vector.shape_cast %328 : vector<1x128xf32> to vector<1x1x128xf32>
      %cst_193 = arith.constant dense<0.000000e+00> : vector<1xf32>
      %330 = vector.multi_reduction <add>, %329, %cst_193 [1, 2] : vector<1x1x128xf32> to vector<1xf32>
      %331 = vector.shape_cast %330 : vector<1xf32> to vector<1x1x1xf32>
      %332 = vector.extract %331[0, 0, 0] : f32 from vector<1x1x1xf32>
      %c0_i32_194 = arith.constant 0 : i32
      %333 = arith.cmpi sgt, %208, %c0_i32_194 : i32
      %c7_195 = arith.constant 7 : index
      %334 = memref.load %arg2[%c7_195] : memref<10xf32, #tpu.memory_space<smem>>
      %cst_196 = arith.constant 5.000000e-01 : f32
      %335 = arith.mulf %cst_196, %334 : f32
      %cst_197 = arith.constant 5.000000e-01 : f32
      %336 = arith.mulf %cst_197, %332 : f32
      %337 = arith.addf %335, %336 : f32
      %338 = arith.select %333, %337, %332 : f32
      %c7_198 = arith.constant 7 : index
      %339 = memref.load %arg6[%c7_198] : memref<10xf32, #tpu.memory_space<smem>>
      memref.store %338, %arg6[%c7_198] : memref<10xf32, #tpu.memory_space<smem>>
      %c7_199 = arith.constant 7 : index
      %c0_200 = arith.constant 0 : index
      %340 = vector.load %arg8[%c7_199, %c0_200] : memref<10x128xf32, #tpu.memory_space<vmem>>, vector<1x128xf32>
      %341 = vector.shape_cast %340 : vector<1x128xf32> to vector<1x1x128xf32>
      %cst_201 = arith.constant dense<0.000000e+00> : vector<1xf32>
      %342 = vector.multi_reduction <add>, %341, %cst_201 [1, 2] : vector<1x1x128xf32> to vector<1xf32>
      %343 = vector.shape_cast %342 : vector<1xf32> to vector<1x1x1xf32>
      %344 = vector.extract %343[0, 0, 0] : f32 from vector<1x1x1xf32>
      %c8_202 = arith.constant 8 : index
      %c0_203 = arith.constant 0 : index
      %345 = vector.load %arg7[%c8_202, %c0_203] : memref<10x128xf32, #tpu.memory_space<vmem>>, vector<1x128xf32>
      %346 = vector.shape_cast %345 : vector<1x128xf32> to vector<1x1x128xf32>
      %cst_204 = arith.constant dense<0.000000e+00> : vector<1xf32>
      %347 = vector.multi_reduction <add>, %346, %cst_204 [1, 2] : vector<1x1x128xf32> to vector<1xf32>
      %348 = vector.shape_cast %347 : vector<1xf32> to vector<1x1x1xf32>
      %349 = vector.extract %348[0, 0, 0] : f32 from vector<1x1x1xf32>
      %c0_i32_205 = arith.constant 0 : i32
      %350 = arith.cmpi sgt, %208, %c0_i32_205 : i32
      %c8_206 = arith.constant 8 : index
      %351 = memref.load %arg2[%c8_206] : memref<10xf32, #tpu.memory_space<smem>>
      %cst_207 = arith.constant 5.000000e-01 : f32
      %352 = arith.mulf %cst_207, %351 : f32
      %cst_208 = arith.constant 5.000000e-01 : f32
      %353 = arith.mulf %cst_208, %349 : f32
      %354 = arith.addf %352, %353 : f32
      %355 = arith.select %350, %354, %349 : f32
      %c8_209 = arith.constant 8 : index
      %356 = memref.load %arg6[%c8_209] : memref<10xf32, #tpu.memory_space<smem>>
      memref.store %355, %arg6[%c8_209] : memref<10xf32, #tpu.memory_space<smem>>
      %c8_210 = arith.constant 8 : index
      %c0_211 = arith.constant 0 : index
      %357 = vector.load %arg8[%c8_210, %c0_211] : memref<10x128xf32, #tpu.memory_space<vmem>>, vector<1x128xf32>
      %358 = vector.shape_cast %357 : vector<1x128xf32> to vector<1x1x128xf32>
      %cst_212 = arith.constant dense<0.000000e+00> : vector<1xf32>
      %359 = vector.multi_reduction <add>, %358, %cst_212 [1, 2] : vector<1x1x128xf32> to vector<1xf32>
      %360 = vector.shape_cast %359 : vector<1xf32> to vector<1x1x1xf32>
      %361 = vector.extract %360[0, 0, 0] : f32 from vector<1x1x1xf32>
      %c9_213 = arith.constant 9 : index
      %c0_214 = arith.constant 0 : index
      %362 = vector.load %arg7[%c9_213, %c0_214] : memref<10x128xf32, #tpu.memory_space<vmem>>, vector<1x128xf32>
      %363 = vector.shape_cast %362 : vector<1x128xf32> to vector<1x1x128xf32>
      %cst_215 = arith.constant dense<0.000000e+00> : vector<1xf32>
      %364 = vector.multi_reduction <add>, %363, %cst_215 [1, 2] : vector<1x1x128xf32> to vector<1xf32>
      %365 = vector.shape_cast %364 : vector<1xf32> to vector<1x1x1xf32>
      %366 = vector.extract %365[0, 0, 0] : f32 from vector<1x1x1xf32>
      %c0_i32_216 = arith.constant 0 : i32
      %367 = arith.cmpi sgt, %208, %c0_i32_216 : i32
      %c9_217 = arith.constant 9 : index
      %368 = memref.load %arg2[%c9_217] : memref<10xf32, #tpu.memory_space<smem>>
      %cst_218 = arith.constant 5.000000e-01 : f32
      %369 = arith.mulf %cst_218, %368 : f32
      %cst_219 = arith.constant 5.000000e-01 : f32
      %370 = arith.mulf %cst_219, %366 : f32
      %371 = arith.addf %369, %370 : f32
      %372 = arith.select %367, %371, %366 : f32
      %c9_220 = arith.constant 9 : index
      %373 = memref.load %arg6[%c9_220] : memref<10xf32, #tpu.memory_space<smem>>
      memref.store %372, %arg6[%c9_220] : memref<10xf32, #tpu.memory_space<smem>>
      %c9_221 = arith.constant 9 : index
      %c0_222 = arith.constant 0 : index
      %374 = vector.load %arg8[%c9_221, %c0_222] : memref<10x128xf32, #tpu.memory_space<vmem>>, vector<1x128xf32>
      %375 = vector.shape_cast %374 : vector<1x128xf32> to vector<1x1x128xf32>
      %cst_223 = arith.constant dense<0.000000e+00> : vector<1xf32>
      %376 = vector.multi_reduction <add>, %375, %cst_223 [1, 2] : vector<1x1x128xf32> to vector<1xf32>
      %377 = vector.shape_cast %376 : vector<1xf32> to vector<1x1x1xf32>
      %378 = vector.extract %377[0, 0, 0] : f32 from vector<1x1x1xf32>
      %cst_224 = arith.constant 0.000000e+00 : f32
      %379 = arith.cmpf ogt, %219, %cst_224 : f32
      %380 = arith.extui %379 : i1 to i32
      %381 = arith.sitofp %380 : i32 to f32
      %cst_225 = arith.constant 0.000000e+00 : f32
      %382 = arith.addf %cst_225, %381 : f32
      %cst_226 = arith.constant 0.000000e+00 : f32
      %383 = arith.cmpf ogt, %236, %cst_226 : f32
      %384 = arith.extui %383 : i1 to i32
      %385 = arith.sitofp %384 : i32 to f32
      %386 = arith.addf %382, %385 : f32
      %cst_227 = arith.constant 0.000000e+00 : f32
      %387 = arith.cmpf ogt, %253, %cst_227 : f32
      %388 = arith.extui %387 : i1 to i32
      %389 = arith.sitofp %388 : i32 to f32
      %390 = arith.addf %386, %389 : f32
      %cst_228 = arith.constant 0.000000e+00 : f32
      %391 = arith.cmpf ogt, %270, %cst_228 : f32
      %392 = arith.extui %391 : i1 to i32
      %393 = arith.sitofp %392 : i32 to f32
      %394 = arith.addf %390, %393 : f32
      %cst_229 = arith.constant 0.000000e+00 : f32
      %395 = arith.cmpf ogt, %287, %cst_229 : f32
      %396 = arith.extui %395 : i1 to i32
      %397 = arith.sitofp %396 : i32 to f32
      %398 = arith.addf %394, %397 : f32
      %cst_230 = arith.constant 0.000000e+00 : f32
      %399 = arith.cmpf ogt, %304, %cst_230 : f32
      %400 = arith.extui %399 : i1 to i32
      %401 = arith.sitofp %400 : i32 to f32
      %402 = arith.addf %398, %401 : f32
      %cst_231 = arith.constant 0.000000e+00 : f32
      %403 = arith.cmpf ogt, %321, %cst_231 : f32
      %404 = arith.extui %403 : i1 to i32
      %405 = arith.sitofp %404 : i32 to f32
      %406 = arith.addf %402, %405 : f32
      %cst_232 = arith.constant 0.000000e+00 : f32
      %407 = arith.cmpf ogt, %338, %cst_232 : f32
      %408 = arith.extui %407 : i1 to i32
      %409 = arith.sitofp %408 : i32 to f32
      %410 = arith.addf %406, %409 : f32
      %cst_233 = arith.constant 0.000000e+00 : f32
      %411 = arith.cmpf ogt, %355, %cst_233 : f32
      %412 = arith.extui %411 : i1 to i32
      %413 = arith.sitofp %412 : i32 to f32
      %414 = arith.addf %410, %413 : f32
      %cst_234 = arith.constant 0.000000e+00 : f32
      %415 = arith.cmpf ogt, %372, %cst_234 : f32
      %416 = arith.extui %415 : i1 to i32
      %417 = arith.sitofp %416 : i32 to f32
      %418 = arith.addf %414, %417 : f32
      %419 = arith.mulf %219, %418 : f32
      %cst_235 = arith.constant 9.99999974E-5 : f32
      %420 = arith.maximumf %419, %cst_235 : f32
      %cst_236 = arith.constant 2.560000e+04 : f32
      %421 = arith.divf %cst_236, %420 : f32
      %422 = arith.mulf %225, %421 : f32
      %cst_237 = arith.constant 0.000000e+00 : f32
      %423 = arith.addf %cst_237, %422 : f32
      %424 = arith.mulf %236, %418 : f32
      %cst_238 = arith.constant 9.99999974E-5 : f32
      %425 = arith.maximumf %424, %cst_238 : f32
      %cst_239 = arith.constant 2.560000e+04 : f32
      %426 = arith.divf %cst_239, %425 : f32
      %427 = arith.mulf %242, %426 : f32
      %428 = arith.addf %423, %427 : f32
      %429 = arith.mulf %253, %418 : f32
      %cst_240 = arith.constant 9.99999974E-5 : f32
      %430 = arith.maximumf %429, %cst_240 : f32
      %cst_241 = arith.constant 2.560000e+04 : f32
      %431 = arith.divf %cst_241, %430 : f32
      %432 = arith.mulf %259, %431 : f32
      %433 = arith.addf %428, %432 : f32
      %434 = arith.mulf %270, %418 : f32
      %cst_242 = arith.constant 9.99999974E-5 : f32
      %435 = arith.maximumf %434, %cst_242 : f32
      %cst_243 = arith.constant 2.560000e+04 : f32
      %436 = arith.divf %cst_243, %435 : f32
      %437 = arith.mulf %276, %436 : f32
      %438 = arith.addf %433, %437 : f32
      %439 = arith.mulf %287, %418 : f32
      %cst_244 = arith.constant 9.99999974E-5 : f32
      %440 = arith.maximumf %439, %cst_244 : f32
      %cst_245 = arith.constant 2.560000e+04 : f32
      %441 = arith.divf %cst_245, %440 : f32
      %442 = arith.mulf %293, %441 : f32
      %443 = arith.addf %438, %442 : f32
      %444 = arith.mulf %304, %418 : f32
      %cst_246 = arith.constant 9.99999974E-5 : f32
      %445 = arith.maximumf %444, %cst_246 : f32
      %cst_247 = arith.constant 2.560000e+04 : f32
      %446 = arith.divf %cst_247, %445 : f32
      %447 = arith.mulf %310, %446 : f32
      %448 = arith.addf %443, %447 : f32
      %449 = arith.mulf %321, %418 : f32
      %cst_248 = arith.constant 9.99999974E-5 : f32
      %450 = arith.maximumf %449, %cst_248 : f32
      %cst_249 = arith.constant 2.560000e+04 : f32
      %451 = arith.divf %cst_249, %450 : f32
      %452 = arith.mulf %327, %451 : f32
      %453 = arith.addf %448, %452 : f32
      %454 = arith.mulf %338, %418 : f32
      %cst_250 = arith.constant 9.99999974E-5 : f32
      %455 = arith.maximumf %454, %cst_250 : f32
      %cst_251 = arith.constant 2.560000e+04 : f32
      %456 = arith.divf %cst_251, %455 : f32
      %457 = arith.mulf %344, %456 : f32
      %458 = arith.addf %453, %457 : f32
      %459 = arith.mulf %355, %418 : f32
      %cst_252 = arith.constant 9.99999974E-5 : f32
      %460 = arith.maximumf %459, %cst_252 : f32
      %cst_253 = arith.constant 2.560000e+04 : f32
      %461 = arith.divf %cst_253, %460 : f32
      %462 = arith.mulf %361, %461 : f32
      %463 = arith.addf %458, %462 : f32
      %464 = arith.mulf %372, %418 : f32
      %cst_254 = arith.constant 9.99999974E-5 : f32
      %465 = arith.maximumf %464, %cst_254 : f32
      %cst_255 = arith.constant 2.560000e+04 : f32
      %466 = arith.divf %cst_255, %465 : f32
      %467 = arith.mulf %378, %466 : f32
      %468 = arith.addf %463, %467 : f32
      %cst_256 = arith.constant 2.560000e+04 : f32
      %469 = arith.divf %468, %cst_256 : f32
      %c0_257 = arith.constant 0 : index
      %470 = memref.load %arg5[%c0_257] : memref<1xf32, #tpu.memory_space<smem>>
      memref.store %469, %arg5[%c0_257] : memref<1xf32, #tpu.memory_space<smem>>
    } else {
    }
    return
  }
  func.func @transform_0(%arg0: i32) -> i32 {
    %c0_i32 = arith.constant 0 : i32
    %c0_i32_0 = arith.constant 0 : i32
    return %c0_i32 : i32
  }
  func.func @transform_1(%arg0: i32) -> i32 {
    %c0_i32 = arith.constant 0 : i32
    %c0_i32_0 = arith.constant 0 : i32
    return %c0_i32 : i32
  }
  func.func @transform_2(%arg0: i32) -> (i32, i32) {
    %c0_i32 = arith.constant 0 : i32
    %c0_i32_0 = arith.constant 0 : i32
    return %arg0, %c0_i32 : i32, i32
  }
  func.func @transform_3(%arg0: i32) -> (i32, i32) {
    %c0_i32 = arith.constant 0 : i32
    %c0_i32_0 = arith.constant 0 : i32
    return %arg0, %c0_i32 : i32, i32
  }
  func.func @transform_4(%arg0: i32) -> i32 {
    %c0_i32 = arith.constant 0 : i32
    %c0_i32_0 = arith.constant 0 : i32
    return %c0_i32 : i32
  }
  func.func @transform_5(%arg0: i32) -> i32 {
    %c0_i32 = arith.constant 0 : i32
    %c0_i32_0 = arith.constant 0 : i32
    return %c0_i32 : i32
  }
}

</mosaic_0001>

<llo_original>
// kernel: tpu_custom_call.1
$region0: #{tpu_custom_call.1}
  #allocation0 [shape = 'u32[]', space=smem, size = 0x4, offset = 0x4, fixed_abs, tag = 'smem constant byte address 0x4 - core index']
  #allocation1 [shape = 'u32[144,128]{1,0:T(1,128)}', space=vmem, size = 0x12000, scoped, tag = 'internal scratch']
  #allocation2 [shape = 'f32[10,128]{1,0:T(8,128)}', space=vmem, size = 0x2000, scoped, tag = 'scratch operand']
  #allocation3 [shape = 'f32[10,128]{1,0:T(8,128)}', space=vmem, size = 0x2000, scoped, tag = 'scratch operand']
  #allocation4 [shape = 's32[1]{0:T(128)S(6)}', space=smem, size = 0x200, scoped, tag = 'scoped memory for tpu_custom_call.1']
  %s0 = inlined_call_operand.<no memory space> [shape: s32[1], index: 0, kind: input, shape index: {}]
  %s1 = inlined_call_operand.vmem [shape: f32[10], index: 1, kind: input, shape index: {}]
  %s2 = inlined_call_operand.hbm [shape: f32[200,128], index: 2, kind: input, shape index: {}]
  %s3 = inlined_call_operand.hbm [shape: f32[200,128], index: 3, kind: input, shape index: {}]
  %s4 = inlined_call_operand.hbm [shape: f32[1], index: 4, kind: output, shape index: {0}]
  %s5 = inlined_call_operand.hbm [shape: f32[10], index: 5, kind: output, shape index: {1}]
  %6 = xla_tuple %s4, %s5
  %s7 = sld [smem:[#allocation0]]
  $region77: #{tpu_custom_call.1} parent=0
    _
  %s9 = ssub.s32 1, %s7
  %s10 = scalar_select 0, %s9, %s7
  %11 = sst [smem:[#allocation4]] %s0
  $region1: #{tpu_custom_call.1} parent=0
    #allocation5 [shape = 'u8[512]{0}', space=smem, size = 0x200, scoped, tag = 'input window, operand 1, single buffered']
    #allocation6 [shape = 's32[2]{0}', space=sflag, size = 0x8, scoped, tag = 'scoped memory for tpu_custom_call.1']
    #allocation7 [shape = 's32[2]{0}', space=sflag, size = 0x8, scoped, tag = 'scoped memory for tpu_custom_call.1']
    #allocation8 [shape = 's32[2]{0}', space=sflag, size = 0x8, scoped, tag = 'scoped memory for tpu_custom_call.1']
    #allocation9 [shape = 'u8[65536]{0}', space=vmem, size = 0x10000, scoped, tag = 'input window, operand 2']
    #allocation10 [shape = 'u8[65536]{0}', space=vmem, size = 0x10000, scoped, tag = 'input window, operand 3']
    #allocation11 [shape = 's32[2]{0}', space=sflag, size = 0x8, scoped, tag = 'scoped memory for tpu_custom_call.1']
    #allocation12 [shape = 'u8[512]{0}', space=smem, size = 0x200, scoped, tag = 'output window, operand 0, single buffered']
    #allocation13 [shape = 'u8[512]{0}', space=smem, size = 0x200, scoped, tag = 'output window, operand 1, single buffered']
    #allocation14 [shape = 's32[1]{0}', space=sflag, size = 0x4, scoped, tag = 'scoped memory for tpu_custom_call.1']
    %12 = vsyncpa [#allocation8], 0
    %13 = vsyncpa [#allocation6], 0
    %s14 = scalar_lea.sflag [#allocation6], 1
    %15 = vsyncpa %s14, 0
    %16 = vsyncpa [#allocation11], 0
    %s17 = scalar_lea.sflag [#allocation11], 1
    %18 = vsyncpa %s17, 0
    %19 = vsyncpa [#allocation7], 0
    %20 = vsyncpa [#allocation14], 0
    loop: start=0, step=1, limit=6
    $region2: #{tpu_custom_call.1} parent=1 // loop_pre_header
      _
    $region3: #{tpu_custom_call.1} parent=1 // loop_header
      %s22 = sphi 0, %s26
      %p23 = scmp.ge.s32.totalorder %s22, 6
      %s30 = sphi 0, %s30
      %s32 = sphi 0, %s30
      %s33 = sphi 0, %s32
      %s47 = sphi 0, %s33
      %s51 = sphi 0, %s51
      %s53 = sphi 0, %s51
      %s54 = sphi 0, %s53
      %s68 = sphi 0, %s54
      %s74 = sphi 0, %s76
      %s77 = sphi 0, %s74
      %s78 = sphi 0, %s77
      %s94 = sphi 0, %s78
      %s100 = sphi 0, %s102
      %s103 = sphi 0, %s100
      %s104 = sphi 0, %s103
      %s120 = sphi 0, %s104
      %s124 = sphi 0, %s124
      %s126 = sphi 0, %s124
      %s127 = sphi 0, %s126
      %s141 = sphi 0, %s127
      %s145 = sphi 0, %s145
      %s147 = sphi 0, %s145
      %s148 = sphi 0, %s147
      %s162 = sphi 0, %s148
    $region4: #{tpu_custom_call.1} parent=1 // loop_header_branch
      %25 = sbr.rel (%p23) target = $region8
    $region5: #{tpu_custom_call.1} parent=1 // loop_body
      %s27 = ssub.s32 %s22, 1
      %s28 = ssub.s32 %s22, 2
      %s29 = sadd.s32 %s22, 1
      %s31 = sadd.s32 %s30, 1
      %p34 = scmp.eq.s32.totalorder %s22, 3
      %p35 = scmp.ne.s32.totalorder %s30, %s32
      %p36 = scmp.eq.s32.totalorder %s22, 0
      %p37 = por %p35, %p36
      %p38 = scmp.ne.s32.totalorder %s30, %s32
      %p39 = scmp.eq.s32.totalorder %s27, 3
      %p40 = por %p38, %p39
      %p41 = scmp.ne.s32.totalorder %s32, %s33
      %p42 = scmp.eq.s32.totalorder %s27, 0
      %p43 = por %p41, %p42
      %p44 = scmp.ne.s32.totalorder %s32, %s33
      %p45 = scmp.eq.s32.totalorder %s28, 3
      %p46 = por %p44, %p45
      %p48 = scmp.ne.s32.totalorder %s33, %s47
      %p49 = scmp.eq.s32.totalorder %s28, 0
      %p50 = por %p48, %p49
      %s52 = sadd.s32 %s51, 1
      %p55 = scmp.eq.s32.totalorder %s22, 3
      %p56 = scmp.ne.s32.totalorder %s51, %s53
      %p57 = scmp.eq.s32.totalorder %s22, 0
      %p58 = por %p56, %p57
      %p59 = scmp.ne.s32.totalorder %s51, %s53
      %p60 = scmp.eq.s32.totalorder %s27, 3
      %p61 = por %p59, %p60
      %p62 = scmp.ne.s32.totalorder %s53, %s54
      %p63 = scmp.eq.s32.totalorder %s27, 0
      %p64 = por %p62, %p63
      %p65 = scmp.ne.s32.totalorder %s53, %s54
      %p66 = scmp.eq.s32.totalorder %s28, 3
      %p67 = por %p65, %p66
      %p69 = scmp.ne.s32.totalorder %s54, %s68
      %p70 = scmp.eq.s32.totalorder %s28, 0
      %p71 = por %p69, %p70
      %s72 = ssub.s32 %s22, %s29
      %p73 = scmp.eq.s32.totalorder %s72, 0
      %s75 = sadd.s32 %s74, 1
      %s76 = scalar_select %p73, %s74, %s75
      %p79 = pneg %p73
      %p80 = scmp.eq.s32.totalorder %s22, 3
      %p81 = por %p79, %p80
      %p82 = scmp.ne.s32.totalorder %s74, %s77
      %p83 = scmp.eq.s32.totalorder %s22, 0
      %p84 = por %p82, %p83
      %p85 = scmp.ne.s32.totalorder %s74, %s77
      %p86 = scmp.eq.s32.totalorder %s27, 3
      %p87 = por %p85, %p86
      %p88 = scmp.ne.s32.totalorder %s77, %s78
      %p89 = scmp.eq.s32.totalorder %s27, 0
      %p90 = por %p88, %p89
      %p91 = scmp.ne.s32.totalorder %s77, %s78
      %p92 = scmp.eq.s32.totalorder %s28, 3
      %p93 = por %p91, %p92
      %p95 = scmp.ne.s32.totalorder %s78, %s94
      %p96 = scmp.eq.s32.totalorder %s28, 0
      %p97 = por %p95, %p96
      %s98 = ssub.s32 %s22, %s29
      %p99 = scmp.eq.s32.totalorder %s98, 0
      %s101 = sadd.s32 %s100, 1
      %s102 = scalar_select %p99, %s100, %s101
      %p105 = pneg %p99
      %p106 = scmp.eq.s32.totalorder %s22, 3
      %p107 = por %p105, %p106
      %p108 = scmp.ne.s32.totalorder %s100, %s103
      %p109 = scmp.eq.s32.totalorder %s22, 0
      %p110 = por %p108, %p109
      %p111 = scmp.ne.s32.totalorder %s100, %s103
      %p112 = scmp.eq.s32.totalorder %s27, 3
      %p113 = por %p111, %p112
      %p114 = scmp.ne.s32.totalorder %s103, %s104
      %p115 = scmp.eq.s32.totalorder %s27, 0
      %p116 = por %p114, %p115
      %p117 = scmp.ne.s32.totalorder %s103, %s104
      %p118 = scmp.eq.s32.totalorder %s28, 3
      %p119 = por %p117, %p118
      %p121 = scmp.ne.s32.totalorder %s104, %s120
      %p122 = scmp.eq.s32.totalorder %s28, 0
      %p123 = por %p121, %p122
      %s125 = sadd.s32 %s124, 1
      %p128 = scmp.eq.s32.totalorder %s22, 3
      %p129 = scmp.ne.s32.totalorder %s124, %s126
      %p130 = scmp.eq.s32.totalorder %s22, 0
      %p131 = por %p129, %p130
      %p132 = scmp.ne.s32.totalorder %s124, %s126
      %p133 = scmp.eq.s32.totalorder %s27, 3
      %p134 = por %p132, %p133
      %p135 = scmp.ne.s32.totalorder %s126, %s127
      %p136 = scmp.eq.s32.totalorder %s27, 0
      %p137 = por %p135, %p136
      %p138 = scmp.ne.s32.totalorder %s126, %s127
      %p139 = scmp.eq.s32.totalorder %s28, 3
      %p140 = por %p138, %p139
      %p142 = scmp.ne.s32.totalorder %s127, %s141
      %p143 = scmp.eq.s32.totalorder %s28, 0
      %p144 = por %p142, %p143
      %s146 = sadd.s32 %s145, 1
      %p149 = scmp.eq.s32.totalorder %s22, 3
      %p150 = scmp.ne.s32.totalorder %s145, %s147
      %p151 = scmp.eq.s32.totalorder %s22, 0
      %p152 = por %p150, %p151
      %p153 = scmp.ne.s32.totalorder %s145, %s147
      %p154 = scmp.eq.s32.totalorder %s27, 3
      %p155 = por %p153, %p154
      %p156 = scmp.ne.s32.totalorder %s147, %s148
      %p157 = scmp.eq.s32.totalorder %s27, 0
      %p158 = por %p156, %p157
      %p159 = scmp.ne.s32.totalorder %s147, %s148
      %p160 = scmp.eq.s32.totalorder %s28, 3
      %p161 = por %p159, %p160
      %p163 = scmp.ne.s32.totalorder %s148, %s162
      %p164 = scmp.eq.s32.totalorder %s28, 0
      %p165 = por %p163, %p164
      %p166 = scmp.le.s32.totalorder 1, %s22
      %p167 = scmp.lt.s32.totalorder %s22, 5
      %p168 = pnand %p166, %p167
      %p169 = pneg %p168
      // Predicated region
      $region9: #{tpu_custom_call.1} parent=5 // pred_check
        _
      $region10: #{tpu_custom_call.1} parent=5 // pred_check_branch
        %171 = sbr.rel (%p168) target = $region12
      $region11: #{tpu_custom_call.1} parent=5 // pred_region
        %s172 = ssub.s32 %s22, 1
        // Predicated region
        $region13: #{tpu_custom_call.1} parent=11 // pred_check
          %p173 = pneg %p43
        $region14: #{tpu_custom_call.1} parent=11 // pred_check_branch
          %175 = sbr.rel (%p173) target = $region16
        $region15: #{tpu_custom_call.1} parent=11 // pred_region
          _
        $region16: #{tpu_custom_call.1} parent=11 // pred_fallthru
          _
        // Predicated region
        $region17: #{tpu_custom_call.1} parent=11 // pred_check
          %p176 = pneg %p64
        $region18: #{tpu_custom_call.1} parent=11 // pred_check_branch
          %178 = sbr.rel (%p176) target = $region20
        $region19: #{tpu_custom_call.1} parent=11 // pred_region
          %s180 = ssub.s32 16, 16
          %181 = vsyncadd [#allocation8], %s180
          %s183 = sshll.u32 %s1, 4
          %s184 = int_to_ptr.vmem [resolvable:$true] %s183
          %186 = dma.vmem_to_smem %s184, 16, [#allocation5], [#allocation8]
        $region20: #{tpu_custom_call.1} parent=11 // pred_fallthru
          _
      $region12: #{tpu_custom_call.1} parent=5 // pred_fallthru
        _
      %p187 = scmp.lt.s32.totalorder %s22, 4
      // Predicated region
      $region21: #{tpu_custom_call.1} parent=5 // pred_check
        %p188 = pneg %p187
      $region22: #{tpu_custom_call.1} parent=5 // pred_check_branch
        %190 = sbr.rel (%p188) target = $region24
      $region23: #{tpu_custom_call.1} parent=5 // pred_region
        // Predicated region
        $region25: #{tpu_custom_call.1} parent=23 // pred_check
          %p191 = pneg %p84
        $region26: #{tpu_custom_call.1} parent=23 // pred_check_branch
          %193 = sbr.rel (%p191) target = $region28
        $region27: #{tpu_custom_call.1} parent=23 // pred_region
          %s194 = sand.u32 %s74, 1
          %s195 = scalar_lea.sflag [#allocation6], %s194
          %s196 = sand.u32 %s74, 1
          %s197 = smul.addr %s196, 64
          %s198 = scalar_lea.vmem [#allocation9], %s197
          %s199 = smul.u32 8, %s22
          %s200 = ssub.s32 25, %s199
          %p201 = scmp.lt.s32.totalorder %s200, 8
          %s202 = scalar_select %p201, %s200, 8
          %s203 = smul.u32 128, %s202
          %s205 = ssub.s32 1024, %s203
          %206 = vsyncadd %s195, %s205
          %p207 = scmp.ne.s32.totalorder 0, %s203
          %s208 = smul.addr %s199, 128
          %s209 = scalar_lea.hbm %s2, %s208
          %s210 = smul.u32 8, %s202
          %s211 = sshll.u32 %s198, 4
          %s212 = int_to_ptr.vmem [resolvable:$true] %s211
          %s213 = sshll.u32 %s210, 4
          %217 = dma.hbm_to_vmem [thread:$0]  (%p207), %s209, %s213, %s212, %s195, 128, 128, 8
        $region28: #{tpu_custom_call.1} parent=23 // pred_fallthru
          _
        // Predicated region
        $region29: #{tpu_custom_call.1} parent=23 // pred_check
          %p218 = pneg %p110
        $region30: #{tpu_custom_call.1} parent=23 // pred_check_branch
          %220 = sbr.rel (%p218) target = $region32
        $region31: #{tpu_custom_call.1} parent=23 // pred_region
          %s221 = sand.u32 %s100, 1
          %s222 = scalar_lea.sflag [#allocation11], %s221
          %s223 = sand.u32 %s100, 1
          %s224 = smul.addr %s223, 64
          %s225 = scalar_lea.vmem [#allocation10], %s224
          %s226 = smul.u32 8, %s22
          %s227 = ssub.s32 25, %s226
          %p228 = scmp.lt.s32.totalorder %s227, 8
          %s229 = scalar_select %p228, %s227, 8
          %s230 = smul.u32 128, %s229
          %s232 = ssub.s32 1024, %s230
          %233 = vsyncadd %s222, %s232
          %p234 = scmp.ne.s32.totalorder 0, %s230
          %s235 = smul.addr %s226, 128
          %s236 = scalar_lea.hbm %s3, %s235
          %s237 = smul.u32 8, %s229
          %s238 = sshll.u32 %s225, 4
          %s239 = int_to_ptr.vmem [resolvable:$true] %s238
          %s240 = sshll.u32 %s237, 4
          %244 = dma.hbm_to_vmem [thread:$0]  (%p234), %s236, %s240, %s239, %s222, 128, 128, 8
        $region32: #{tpu_custom_call.1} parent=23 // pred_fallthru
          _
      $region24: #{tpu_custom_call.1} parent=5 // pred_fallthru
        _
      %p245 = scmp.le.s32.totalorder 1, %s22
      %p246 = scmp.lt.s32.totalorder %s22, 5
      %p247 = pnand %p245, %p246
      %p248 = pneg %p247
      // Predicated region
      $region33: #{tpu_custom_call.1} parent=5 // pred_check
        _
      $region34: #{tpu_custom_call.1} parent=5 // pred_check_branch
        %250 = sbr.rel (%p247) target = $region36
      $region35: #{tpu_custom_call.1} parent=5 // pred_region
        %s251 = ssub.s32 %s22, 1
        // Predicated region
        $region37: #{tpu_custom_call.1} parent=35 // pred_check
          %p252 = pneg %p64
        $region38: #{tpu_custom_call.1} parent=35 // pred_check_branch
          %254 = sbr.rel (%p252) target = $region40
        $region39: #{tpu_custom_call.1} parent=35 // pred_region
          %255 = dma.done [#allocation8], 16
        $region40: #{tpu_custom_call.1} parent=35 // pred_fallthru
          _
        %s256 = sand.u32 %s77, 1
        %s257 = scalar_lea.sflag [#allocation6], %s256
        %s258 = sand.u32 %s77, 1
        %s259 = smul.addr %s258, 64
        %s260 = scalar_lea.vmem [#allocation9], %s259
        // Predicated region
        $region41: #{tpu_custom_call.1} parent=35 // pred_check
          %p261 = pneg %p90
        $region42: #{tpu_custom_call.1} parent=35 // pred_check_branch
          %263 = sbr.rel (%p261) target = $region44
        $region43: #{tpu_custom_call.1} parent=35 // pred_region
          %264 = dma.done %s257, 1024
        $region44: #{tpu_custom_call.1} parent=35 // pred_fallthru
          _
        %s265 = sand.u32 %s103, 1
        %s266 = scalar_lea.sflag [#allocation11], %s265
        %s267 = sand.u32 %s103, 1
        %s268 = smul.addr %s267, 64
        %s269 = scalar_lea.vmem [#allocation10], %s268
        // Predicated region
        $region45: #{tpu_custom_call.1} parent=35 // pred_check
          %p270 = pneg %p116
        $region46: #{tpu_custom_call.1} parent=35 // pred_check_branch
          %272 = sbr.rel (%p270) target = $region48
        $region47: #{tpu_custom_call.1} parent=35 // pred_region
          %273 = dma.done %s266, 1024
        $region48: #{tpu_custom_call.1} parent=35 // pred_fallthru
          _
        %274 = sfence
        %p275 = pneg %p43
        %p276 = pneg %p40
        %p277 = pneg %p64
        %p278 = pneg %p61
        %s279 = sand.u32 %s77, 1
        %s280 = scalar_lea.sflag [#allocation6], %s279
        %s281 = sand.u32 %s77, 1
        %s282 = smul.addr %s281, 64
        %s283 = scalar_lea.vmem [#allocation9], %s282
        %p284 = pneg %p90
        %p285 = pneg %p87
        %s286 = sand.u32 %s103, 1
        %s287 = scalar_lea.sflag [#allocation11], %s286
        %s288 = sand.u32 %s103, 1
        %s289 = smul.addr %s288, 64
        %s290 = scalar_lea.vmem [#allocation10], %s289
        %p291 = pneg %p116
        %p292 = pneg %p113
        %p293 = pneg %p137
        %p294 = pneg %p134
        %p295 = pneg %p158
        %p296 = pneg %p155
        %s297 = smul.u32 8, %s27
        %s298 = ssub.s32 25, %s297
        %p299 = scmp.lt.s32.totalorder %s298, 8
        %s300 = scalar_select %p299, %s298, 8
        %s301 = smul.u32 128, %s300
        %s302 = smul.u32 8, %s27
        %s303 = ssub.s32 25, %s302
        %p304 = scmp.lt.s32.totalorder %s303, 8
        %s305 = scalar_select %p304, %s303, 8
        %s306 = smul.u32 128, %s305
        %p307 = scmp.eq.s32.totalorder %s27, 0
        // Predicated region
        $region49: #{tpu_custom_call.1} parent=35 // pred_check
          %p308 = pneg %p307
        $region50: #{tpu_custom_call.1} parent=35 // pred_check_branch
          %310 = sbr.rel (%p308) target = $region52
        $region51: #{tpu_custom_call.1} parent=35 // pred_region
          %311 = vst [vmem:[#allocation2] sm:$0xff] 0.0
          %312 = vst [vmem:[#allocation2 + $0x8] sm:$0x3] 0.0
          %313 = vst [vmem:[#allocation3] sm:$0xff] 0.0
          %314 = vst [vmem:[#allocation3 + $0x8] sm:$0x3] 0.0
        $region52: #{tpu_custom_call.1} parent=35 // pred_fallthru
          _
        %v315 = vld [vmem:[%s260] sm:$0xff]
        %v316 = vld [vmem:[%s260 + $0x8] sm:$0xff]
        %v317 = vld [vmem:[%s260 + $0x10] sm:$0xff]
        %v318 = vld [vmem:[%s260 + $0x18] sm:$0xff]
        %v319 = vld [vmem:[%s260 + $0x20] sm:$0xff]
        %v320 = vld [vmem:[%s260 + $0x28] sm:$0xff]
        %v321 = vld [vmem:[%s260 + $0x30] sm:$0xff]
        %v322 = vld [vmem:[%s260 + $0x38] sm:$0xff]
        %v323 = vld [vmem:[%s269] sm:$0xff]
        %v324 = vld [vmem:[%s269 + $0x8] sm:$0xff]
        %v325 = vld [vmem:[%s269 + $0x10] sm:$0xff]
        %v326 = vld [vmem:[%s269 + $0x18] sm:$0xff]
        %v327 = vld [vmem:[%s269 + $0x20] sm:$0xff]
        %v328 = vld [vmem:[%s269 + $0x28] sm:$0xff]
        %v329 = vld [vmem:[%s269 + $0x30] sm:$0xff]
        %v330 = vld [vmem:[%s269 + $0x38] sm:$0xff]
        %v331 = vand.u32 2147483647, %v315
        %v332 = vand.u32 2147483647, %v316
        %v333 = vand.u32 2147483647, %v317
        %v334 = vand.u32 2147483647, %v318
        %v335 = vand.u32 2147483647, %v319
        %v336 = vand.u32 2147483647, %v320
        %v337 = vand.u32 2147483647, %v321
        %v338 = vand.u32 2147483647, %v322
        %v339 = vsub.f32 0.0, %v331
        %v340 = vsub.f32 0.0, %v332
        %v341 = vsub.f32 0.0, %v333
        %v342 = vsub.f32 0.0, %v334
        %v343 = vsub.f32 0.0, %v335
        %v344 = vsub.f32 0.0, %v336
        %v345 = vsub.f32 0.0, %v337
        %v346 = vsub.f32 0.0, %v338
        %v347 = vmul.f32 %v339, 1.442695
        %v348 = vpow.pop %v347
        %v349 = vmul.f32 %v340, 1.442695
        %v350 = vpow.pop %v349
        %v351 = vmul.f32 %v341, 1.442695
        %v352 = vpow.pop %v351
        %v353 = vmul.f32 %v342, 1.442695
        %v354 = vpow.pop %v353
        %v355 = vmul.f32 %v343, 1.442695
        %v356 = vpow.pop %v355
        %v357 = vmul.f32 %v344, 1.442695
        %v358 = vpow.pop %v357
        %v359 = vmul.f32 %v345, 1.442695
        %v360 = vpow.pop %v359
        %v361 = vmul.f32 %v346, 1.442695
        %v362 = vpow.pop %v361
        %v363 = vadd.f32 %v348, 1.0
        %v364 = vadd.f32 %v350, 1.0
        %v365 = vadd.f32 %v352, 1.0
        %v366 = vadd.f32 %v354, 1.0
        %v367 = vadd.f32 %v356, 1.0
        %v368 = vadd.f32 %v358, 1.0
        %v369 = vadd.f32 %v360, 1.0
        %v370 = vadd.f32 %v362, 1.0
        %v371 = vrcp.pop %v363
        %v372 = vmul.f32 1.0, %v371
        %v373 = vrcp.pop %v364
        %v374 = vmul.f32 1.0, %v373
        %v375 = vrcp.pop %v365
        %v376 = vmul.f32 1.0, %v375
        %v377 = vrcp.pop %v366
        %v378 = vmul.f32 1.0, %v377
        %v379 = vrcp.pop %v367
        %v380 = vmul.f32 1.0, %v379
        %v381 = vrcp.pop %v368
        %v382 = vmul.f32 1.0, %v381
        %v383 = vrcp.pop %v369
        %v384 = vmul.f32 1.0, %v383
        %v385 = vrcp.pop %v370
        %v386 = vmul.f32 1.0, %v385
        %vm387 = vcmp.ge.f32.partialorder %v315, 0.0
        %vm388 = vcmp.ge.f32.partialorder %v316, 0.0
        %vm389 = vcmp.ge.f32.partialorder %v317, 0.0
        %vm390 = vcmp.ge.f32.partialorder %v318, 0.0
        %vm391 = vcmp.ge.f32.partialorder %v319, 0.0
        %vm392 = vcmp.ge.f32.partialorder %v320, 0.0
        %vm393 = vcmp.ge.f32.partialorder %v321, 0.0
        %vm394 = vcmp.ge.f32.partialorder %v322, 0.0
        %v395 = vmul.f32 %v348, %v372
        %v396 = vmul.f32 %v350, %v374
        %v397 = vmul.f32 %v352, %v376
        %v398 = vmul.f32 %v354, %v378
        %v399 = vmul.f32 %v356, %v380
        %v400 = vmul.f32 %v358, %v382
        %v401 = vmul.f32 %v360, %v384
        %v402 = vmul.f32 %v362, %v386
        %v403 = vsel %vm387, %v372, %v395
        %v404 = vsel %vm388, %v374, %v396
        %v405 = vsel %vm389, %v376, %v397
        %v406 = vsel %vm390, %v378, %v398
        %v407 = vsel %vm391, %v380, %v399
        %v408 = vsel %vm392, %v382, %v400
        %v409 = vsel %vm393, %v384, %v401
        %v410 = vsel %vm394, %v386, %v402
        %v411 = vmax.f32 %v315, 0.0
        %v412 = vmax.f32 %v316, 0.0
        %v413 = vmax.f32 %v317, 0.0
        %v414 = vmax.f32 %v318, 0.0
        %v415 = vmax.f32 %v319, 0.0
        %v416 = vmax.f32 %v320, 0.0
        %v417 = vmax.f32 %v321, 0.0
        %v418 = vmax.f32 %v322, 0.0
        %v419 = vmul.f32 %v315, %v323
        %v420 = vmul.f32 %v316, %v324
        %v421 = vmul.f32 %v317, %v325
        %v422 = vmul.f32 %v318, %v326
        %v423 = vmul.f32 %v319, %v327
        %v424 = vmul.f32 %v320, %v328
        %v425 = vmul.f32 %v321, %v329
        %v426 = vmul.f32 %v322, %v330
        %v427 = vsub.f32 %v411, %v419
        %v428 = vsub.f32 %v412, %v420
        %v429 = vsub.f32 %v413, %v421
        %v430 = vsub.f32 %v414, %v422
        %v431 = vsub.f32 %v415, %v423
        %v432 = vsub.f32 %v416, %v424
        %v433 = vsub.f32 %v417, %v425
        %v434 = vsub.f32 %v418, %v426
        %v435 = vadd.f32 %v348, 1.0
        %v436 = vlog2.pop %v435
        %v437 = vmul.f32 %v436, 0.6931472
        %v438 = vmul.f32 -0.5, %v348
        %v439 = vadd.f32 %v438, 1.0
        %v440 = vmul.f32 %v439, %v348
        %v441 = vand.u32 2147483647, %v348
        %vm442 = vcmp.lt.f32.partialorder %v441, 0.0004427343
        %v443 = vsel %vm442, %v440, %v437
        %v444 = vadd.f32 %v350, 1.0
        %v445 = vlog2.pop %v444
        %v446 = vmul.f32 %v445, 0.6931472
        %v447 = vmul.f32 -0.5, %v350
        %v448 = vadd.f32 %v447, 1.0
        %v449 = vmul.f32 %v448, %v350
        %v450 = vand.u32 2147483647, %v350
        %vm451 = vcmp.lt.f32.partialorder %v450, 0.0004427343
        %v452 = vsel %vm451, %v449, %v446
        %v453 = vadd.f32 %v352, 1.0
        %v454 = vlog2.pop %v453
        %v455 = vmul.f32 %v454, 0.6931472
        %v456 = vmul.f32 -0.5, %v352
        %v457 = vadd.f32 %v456, 1.0
        %v458 = vmul.f32 %v457, %v352
        %v459 = vand.u32 2147483647, %v352
        %vm460 = vcmp.lt.f32.partialorder %v459, 0.0004427343
        %v461 = vsel %vm460, %v458, %v455
        %v462 = vadd.f32 %v354, 1.0
        %v463 = vlog2.pop %v462
        %v464 = vmul.f32 %v463, 0.6931472
        %v465 = vmul.f32 -0.5, %v354
        %v466 = vadd.f32 %v465, 1.0
        %v467 = vmul.f32 %v466, %v354
        %v468 = vand.u32 2147483647, %v354
        %vm469 = vcmp.lt.f32.partialorder %v468, 0.0004427343
        %v470 = vsel %vm469, %v467, %v464
        %v471 = vadd.f32 %v356, 1.0
        %v472 = vlog2.pop %v471
        %v473 = vmul.f32 %v472, 0.6931472
        %v474 = vmul.f32 -0.5, %v356
        %v475 = vadd.f32 %v474, 1.0
        %v476 = vmul.f32 %v475, %v356
        %v477 = vand.u32 2147483647, %v356
        %vm478 = vcmp.lt.f32.partialorder %v477, 0.0004427343
        %v479 = vsel %vm478, %v476, %v473
        %v480 = vadd.f32 %v358, 1.0
        %v481 = vlog2.pop %v480
        %v482 = vmul.f32 %v481, 0.6931472
        %v483 = vmul.f32 -0.5, %v358
        %v484 = vadd.f32 %v483, 1.0
        %v485 = vmul.f32 %v484, %v358
        %v486 = vand.u32 2147483647, %v358
        %vm487 = vcmp.lt.f32.partialorder %v486, 0.0004427343
        %v488 = vsel %vm487, %v485, %v482
        %v489 = vadd.f32 %v360, 1.0
        %v490 = vlog2.pop %v489
        %v491 = vmul.f32 %v490, 0.6931472
        %v492 = vmul.f32 -0.5, %v360
        %v493 = vadd.f32 %v492, 1.0
        %v494 = vmul.f32 %v493, %v360
        %v495 = vand.u32 2147483647, %v360
        %vm496 = vcmp.lt.f32.partialorder %v495, 0.0004427343
        %v497 = vsel %vm496, %v494, %v491
        %v498 = vadd.f32 %v362, 1.0
        %v499 = vlog2.pop %v498
        %v500 = vmul.f32 %v499, 0.6931472
        %v501 = vmul.f32 -0.5, %v362
        %v502 = vadd.f32 %v501, 1.0
        %v503 = vmul.f32 %v502, %v362
        %v504 = vand.u32 2147483647, %v362
        %vm505 = vcmp.lt.f32.partialorder %v504, 0.0004427343
        %v506 = vsel %vm505, %v503, %v500
        %v507 = vadd.f32 %v427, %v443
        %v508 = vadd.f32 %v428, %v452
        %v509 = vadd.f32 %v429, %v461
        %v510 = vadd.f32 %v430, %v470
        %v511 = vadd.f32 %v431, %v479
        %v512 = vadd.f32 %v432, %v488
        %v513 = vadd.f32 %v433, %v497
        %v514 = vadd.f32 %v434, %v506
        %v515 = vsub.f32 %v403, %v323
        %v516 = vsub.f32 %v404, %v324
        %v517 = vsub.f32 %v405, %v325
        %v518 = vsub.f32 %v406, %v326
        %v519 = vsub.f32 %v407, %v327
        %v520 = vsub.f32 %v408, %v328
        %v521 = vsub.f32 %v409, %v329
        %v522 = vsub.f32 %v410, %v330
        %v523 = vand.u32 2147483647, %v515
        %v524 = vand.u32 2147483647, %v516
        %v525 = vand.u32 2147483647, %v517
        %v526 = vand.u32 2147483647, %v518
        %v527 = vand.u32 2147483647, %v519
        %v528 = vand.u32 2147483647, %v520
        %v529 = vand.u32 2147483647, %v521
        %v530 = vand.u32 2147483647, %v522
        %v531 = vmul.f32 %v523, 9.9999
        %v532 = vmul.f32 %v524, 9.9999
        %v533 = vmul.f32 %v525, 9.9999
        %v534 = vmul.f32 %v526, 9.9999
        %v535 = vmul.f32 %v527, 9.9999
        %v536 = vmul.f32 %v528, 9.9999
        %v537 = vmul.f32 %v529, 9.9999
        %v538 = vmul.f32 %v530, 9.9999
        %v539 = vfloor.f32 %v531
        %v540 = vfloor.f32 %v532
        %v541 = vfloor.f32 %v533
        %v542 = vfloor.f32 %v534
        %v543 = vfloor.f32 %v535
        %v544 = vfloor.f32 %v536
        %v545 = vfloor.f32 %v537
        %v546 = vfloor.f32 %v538
        %v547 = vcvt.f32.s32.to.zero.pseudo %v539
        %v548 = vcvt.f32.s32.to.zero.pseudo %v540
        %v549 = vcvt.f32.s32.to.zero.pseudo %v541
        %v550 = vcvt.f32.s32.to.zero.pseudo %v542
        %v551 = vcvt.f32.s32.to.zero.pseudo %v543
        %v552 = vcvt.f32.s32.to.zero.pseudo %v544
        %v553 = vcvt.f32.s32.to.zero.pseudo %v545
        %v554 = vcvt.f32.s32.to.zero.pseudo %v546
        %s555 = smul.u32 %s27, 64
        %v556 = vlaneseq
        %v557 = vshrl.u32 %v556, 7
        %v558 = vadd.s32 %v557, 8
        %v559 = vadd.s32 %v557, 16
        %v560 = vadd.s32 %v557, 24
        %v561 = vadd.s32 %v557, 32
        %v562 = vadd.s32 %v557, 40
        %v563 = vadd.s32 %v557, 48
        %v564 = vadd.s32 %v557, 56
        %v565 = vstv %s555
        %v566 = vadd.s32 %v565, %v557
        %v567 = vadd.s32 %v565, %v558
        %v568 = vadd.s32 %v565, %v559
        %v569 = vadd.s32 %v565, %v560
        %v570 = vadd.s32 %v565, %v561
        %v571 = vadd.s32 %v565, %v562
        %v572 = vadd.s32 %v565, %v563
        %v573 = vadd.s32 %v565, %v564
        %vm574 = vcmp.lt.s32.totalorder %v566, 200
        %vm575 = vcmp.lt.s32.totalorder %v567, 200
        %vm576 = vcmp.lt.s32.totalorder %v568, 200
        %vm577 = vcmp.lt.s32.totalorder %v569, 200
        %vm578 = vcmp.lt.s32.totalorder %v570, 200
        %vm579 = vcmp.lt.s32.totalorder %v571, 200
        %vm580 = vcmp.lt.s32.totalorder %v572, 200
        %vm581 = vcmp.lt.s32.totalorder %v573, 200
        %vm582 = vcmp.eq.s32.totalorder %v547, 0
        %vm583 = vcmp.eq.s32.totalorder %v548, 0
        %vm584 = vcmp.eq.s32.totalorder %v549, 0
        %vm585 = vcmp.eq.s32.totalorder %v550, 0
        %vm586 = vcmp.eq.s32.totalorder %v551, 0
        %vm587 = vcmp.eq.s32.totalorder %v552, 0
        %vm588 = vcmp.eq.s32.totalorder %v553, 0
        %vm589 = vcmp.eq.s32.totalorder %v554, 0
        %vm590 = vmand %vm582, %vm574
        %vm591 = vmand %vm583, %vm575
        %vm592 = vmand %vm584, %vm576
        %vm593 = vmand %vm585, %vm577
        %vm594 = vmand %vm586, %vm578
        %vm595 = vmand %vm587, %vm579
        %vm596 = vmand %vm588, %vm580
        %vm597 = vmand %vm589, %vm581
        %v598 = vsel %vm590, 1, 0
        %v599 = vsel %vm591, 1, 0
        %v600 = vsel %vm592, 1, 0
        %v601 = vsel %vm593, 1, 0
        %v602 = vsel %vm594, 1, 0
        %v603 = vsel %vm595, 1, 0
        %v604 = vsel %vm596, 1, 0
        %v605 = vsel %vm597, 1, 0
        %v606 = vcvt.s32.f32 %v598
        %v607 = vcvt.s32.f32 %v599
        %v608 = vcvt.s32.f32 %v600
        %v609 = vcvt.s32.f32 %v601
        %v610 = vcvt.s32.f32 %v602
        %v611 = vcvt.s32.f32 %v603
        %v612 = vcvt.s32.f32 %v604
        %v613 = vcvt.s32.f32 %v605
        %v614 = vadd.f32 %v606, %v607
        %v615 = vadd.f32 %v614, %v608
        %v616 = vadd.f32 %v615, %v609
        %v617 = vadd.f32 %v616, %v610
        %v618 = vadd.f32 %v617, %v611
        %v619 = vadd.f32 %v618, %v612
        %v620 = vadd.f32 %v619, %v613
        %v621 = vrot.slane %v620, 4
        %v622 = vadd.f32 %v620, %v621
        %v623 = vrot.slane %v622, 2
        %v624 = vadd.f32 %v622, %v623
        %v625 = vrot.slane %v624, 1
        %v626 = vadd.f32 %v624, %v625
        %v627 = vsel %vm590, %v507, 0.0
        %v628 = vsel %vm591, %v508, 0.0
        %v629 = vsel %vm592, %v509, 0.0
        %v630 = vsel %vm593, %v510, 0.0
        %v631 = vsel %vm594, %v511, 0.0
        %v632 = vsel %vm595, %v512, 0.0
        %v633 = vsel %vm596, %v513, 0.0
        %v634 = vsel %vm597, %v514, 0.0
        %v635 = vadd.f32 %v627, %v628
        %v636 = vadd.f32 %v635, %v629
        %v637 = vadd.f32 %v636, %v630
        %v638 = vadd.f32 %v637, %v631
        %v639 = vadd.f32 %v638, %v632
        %v640 = vadd.f32 %v639, %v633
        %v641 = vadd.f32 %v640, %v634
        %v642 = vrot.slane %v641, 4
        %v643 = vadd.f32 %v641, %v642
        %v644 = vrot.slane %v643, 2
        %v645 = vadd.f32 %v643, %v644
        %v646 = vrot.slane %v645, 1
        %v647 = vadd.f32 %v645, %v646
        %v648 = vld [vmem:[#allocation2] sm:$0x1]
        %v649 = vadd.f32 %v648, %v626
        %650 = vst [vmem:[#allocation2] sm:$0x1] %v649
        %v651 = vld [vmem:[#allocation3] sm:$0x1]
        %v652 = vadd.f32 %v651, %v647
        %653 = vst [vmem:[#allocation3] sm:$0x1] %v652
        %vm654 = vcmp.eq.s32.totalorder %v547, 1
        %vm655 = vcmp.eq.s32.totalorder %v548, 1
        %vm656 = vcmp.eq.s32.totalorder %v549, 1
        %vm657 = vcmp.eq.s32.totalorder %v550, 1
        %vm658 = vcmp.eq.s32.totalorder %v551, 1
        %vm659 = vcmp.eq.s32.totalorder %v552, 1
        %vm660 = vcmp.eq.s32.totalorder %v553, 1
        %vm661 = vcmp.eq.s32.totalorder %v554, 1
        %vm662 = vmand %vm654, %vm574
        %vm663 = vmand %vm655, %vm575
        %vm664 = vmand %vm656, %vm576
        %vm665 = vmand %vm657, %vm577
        %vm666 = vmand %vm658, %vm578
        %vm667 = vmand %vm659, %vm579
        %vm668 = vmand %vm660, %vm580
        %vm669 = vmand %vm661, %vm581
        %v670 = vsel %vm662, 1, 0
        %v671 = vsel %vm663, 1, 0
        %v672 = vsel %vm664, 1, 0
        %v673 = vsel %vm665, 1, 0
        %v674 = vsel %vm666, 1, 0
        %v675 = vsel %vm667, 1, 0
        %v676 = vsel %vm668, 1, 0
        %v677 = vsel %vm669, 1, 0
        %v678 = vcvt.s32.f32 %v670
        %v679 = vcvt.s32.f32 %v671
        %v680 = vcvt.s32.f32 %v672
        %v681 = vcvt.s32.f32 %v673
        %v682 = vcvt.s32.f32 %v674
        %v683 = vcvt.s32.f32 %v675
        %v684 = vcvt.s32.f32 %v676
        %v685 = vcvt.s32.f32 %v677
        %v686 = vadd.f32 %v678, %v679
        %v687 = vadd.f32 %v686, %v680
        %v688 = vadd.f32 %v687, %v681
        %v689 = vadd.f32 %v688, %v682
        %v690 = vadd.f32 %v689, %v683
        %v691 = vadd.f32 %v690, %v684
        %v692 = vadd.f32 %v691, %v685
        %v693 = vrot.slane %v692, 4
        %v694 = vadd.f32 %v692, %v693
        %v695 = vrot.slane %v694, 2
        %v696 = vadd.f32 %v694, %v695
        %v697 = vrot.slane %v696, 1
        %v698 = vadd.f32 %v696, %v697
        %v699 = vsel %vm662, %v507, 0.0
        %v700 = vsel %vm663, %v508, 0.0
        %v701 = vsel %vm664, %v509, 0.0
        %v702 = vsel %vm665, %v510, 0.0
        %v703 = vsel %vm666, %v511, 0.0
        %v704 = vsel %vm667, %v512, 0.0
        %v705 = vsel %vm668, %v513, 0.0
        %v706 = vsel %vm669, %v514, 0.0
        %v707 = vadd.f32 %v699, %v700
        %v708 = vadd.f32 %v707, %v701
        %v709 = vadd.f32 %v708, %v702
        %v710 = vadd.f32 %v709, %v703
        %v711 = vadd.f32 %v710, %v704
        %v712 = vadd.f32 %v711, %v705
        %v713 = vadd.f32 %v712, %v706
        %v714 = vrot.slane %v713, 4
        %v715 = vadd.f32 %v713, %v714
        %v716 = vrot.slane %v715, 2
        %v717 = vadd.f32 %v715, %v716
        %v718 = vrot.slane %v717, 1
        %v719 = vadd.f32 %v717, %v718
        %v720 = vld [vmem:[#allocation2 + $0x1] sm:$0x1]
        %v721 = vadd.f32 %v720, %v698
        %722 = vst [vmem:[#allocation2 + $0x1] sm:$0x1] %v721
        %v723 = vld [vmem:[#allocation3 + $0x1] sm:$0x1]
        %v724 = vadd.f32 %v723, %v719
        %725 = vst [vmem:[#allocation3 + $0x1] sm:$0x1] %v724
        %vm726 = vcmp.eq.s32.totalorder %v547, 2
        %vm727 = vcmp.eq.s32.totalorder %v548, 2
        %vm728 = vcmp.eq.s32.totalorder %v549, 2
        %vm729 = vcmp.eq.s32.totalorder %v550, 2
        %vm730 = vcmp.eq.s32.totalorder %v551, 2
        %vm731 = vcmp.eq.s32.totalorder %v552, 2
        %vm732 = vcmp.eq.s32.totalorder %v553, 2
        %vm733 = vcmp.eq.s32.totalorder %v554, 2
        %vm734 = vmand %vm726, %vm574
        %vm735 = vmand %vm727, %vm575
        %vm736 = vmand %vm728, %vm576
        %vm737 = vmand %vm729, %vm577
        %vm738 = vmand %vm730, %vm578
        %vm739 = vmand %vm731, %vm579
        %vm740 = vmand %vm732, %vm580
        %vm741 = vmand %vm733, %vm581
        %v742 = vsel %vm734, 1, 0
        %v743 = vsel %vm735, 1, 0
        %v744 = vsel %vm736, 1, 0
        %v745 = vsel %vm737, 1, 0
        %v746 = vsel %vm738, 1, 0
        %v747 = vsel %vm739, 1, 0
        %v748 = vsel %vm740, 1, 0
        %v749 = vsel %vm741, 1, 0
        %v750 = vcvt.s32.f32 %v742
        %v751 = vcvt.s32.f32 %v743
        %v752 = vcvt.s32.f32 %v744
        %v753 = vcvt.s32.f32 %v745
        %v754 = vcvt.s32.f32 %v746
        %v755 = vcvt.s32.f32 %v747
        %v756 = vcvt.s32.f32 %v748
        %v757 = vcvt.s32.f32 %v749
        %v758 = vadd.f32 %v750, %v751
        %v759 = vadd.f32 %v758, %v752
        %v760 = vadd.f32 %v759, %v753
        %v761 = vadd.f32 %v760, %v754
        %v762 = vadd.f32 %v761, %v755
        %v763 = vadd.f32 %v762, %v756
        %v764 = vadd.f32 %v763, %v757
        %v765 = vrot.slane %v764, 4
        %v766 = vadd.f32 %v764, %v765
        %v767 = vrot.slane %v766, 2
        %v768 = vadd.f32 %v766, %v767
        %v769 = vrot.slane %v768, 1
        %v770 = vadd.f32 %v768, %v769
        %v771 = vsel %vm734, %v507, 0.0
        %v772 = vsel %vm735, %v508, 0.0
        %v773 = vsel %vm736, %v509, 0.0
        %v774 = vsel %vm737, %v510, 0.0
        %v775 = vsel %vm738, %v511, 0.0
        %v776 = vsel %vm739, %v512, 0.0
        %v777 = vsel %vm740, %v513, 0.0
        %v778 = vsel %vm741, %v514, 0.0
        %v779 = vadd.f32 %v771, %v772
        %v780 = vadd.f32 %v779, %v773
        %v781 = vadd.f32 %v780, %v774
        %v782 = vadd.f32 %v781, %v775
        %v783 = vadd.f32 %v782, %v776
        %v784 = vadd.f32 %v783, %v777
        %v785 = vadd.f32 %v784, %v778
        %v786 = vrot.slane %v785, 4
        %v787 = vadd.f32 %v785, %v786
        %v788 = vrot.slane %v787, 2
        %v789 = vadd.f32 %v787, %v788
        %v790 = vrot.slane %v789, 1
        %v791 = vadd.f32 %v789, %v790
        %v792 = vld [vmem:[#allocation2 + $0x2] sm:$0x1]
        %v793 = vadd.f32 %v792, %v770
        %794 = vst [vmem:[#allocation2 + $0x2] sm:$0x1] %v793
        %v795 = vld [vmem:[#allocation3 + $0x2] sm:$0x1]
        %v796 = vadd.f32 %v795, %v791
        %797 = vst [vmem:[#allocation3 + $0x2] sm:$0x1] %v796
        %vm798 = vcmp.eq.s32.totalorder %v547, 3
        %vm799 = vcmp.eq.s32.totalorder %v548, 3
        %vm800 = vcmp.eq.s32.totalorder %v549, 3
        %vm801 = vcmp.eq.s32.totalorder %v550, 3
        %vm802 = vcmp.eq.s32.totalorder %v551, 3
        %vm803 = vcmp.eq.s32.totalorder %v552, 3
        %vm804 = vcmp.eq.s32.totalorder %v553, 3
        %vm805 = vcmp.eq.s32.totalorder %v554, 3
        %vm806 = vmand %vm798, %vm574
        %vm807 = vmand %vm799, %vm575
        %vm808 = vmand %vm800, %vm576
        %vm809 = vmand %vm801, %vm577
        %vm810 = vmand %vm802, %vm578
        %vm811 = vmand %vm803, %vm579
        %vm812 = vmand %vm804, %vm580
        %vm813 = vmand %vm805, %vm581
        %v814 = vsel %vm806, 1, 0
        %v815 = vsel %vm807, 1, 0
        %v816 = vsel %vm808, 1, 0
        %v817 = vsel %vm809, 1, 0
        %v818 = vsel %vm810, 1, 0
        %v819 = vsel %vm811, 1, 0
        %v820 = vsel %vm812, 1, 0
        %v821 = vsel %vm813, 1, 0
        %v822 = vcvt.s32.f32 %v814
        %v823 = vcvt.s32.f32 %v815
        %v824 = vcvt.s32.f32 %v816
        %v825 = vcvt.s32.f32 %v817
        %v826 = vcvt.s32.f32 %v818
        %v827 = vcvt.s32.f32 %v819
        %v828 = vcvt.s32.f32 %v820
        %v829 = vcvt.s32.f32 %v821
        %v830 = vadd.f32 %v822, %v823
        %v831 = vadd.f32 %v830, %v824
        %v832 = vadd.f32 %v831, %v825
        %v833 = vadd.f32 %v832, %v826
        %v834 = vadd.f32 %v833, %v827
        %v835 = vadd.f32 %v834, %v828
        %v836 = vadd.f32 %v835, %v829
        %v837 = vrot.slane %v836, 4
        %v838 = vadd.f32 %v836, %v837
        %v839 = vrot.slane %v838, 2
        %v840 = vadd.f32 %v838, %v839
        %v841 = vrot.slane %v840, 1
        %v842 = vadd.f32 %v840, %v841
        %v843 = vsel %vm806, %v507, 0.0
        %v844 = vsel %vm807, %v508, 0.0
        %v845 = vsel %vm808, %v509, 0.0
        %v846 = vsel %vm809, %v510, 0.0
        %v847 = vsel %vm810, %v511, 0.0
        %v848 = vsel %vm811, %v512, 0.0
        %v849 = vsel %vm812, %v513, 0.0
        %v850 = vsel %vm813, %v514, 0.0
        %v851 = vadd.f32 %v843, %v844
        %v852 = vadd.f32 %v851, %v845
        %v853 = vadd.f32 %v852, %v846
        %v854 = vadd.f32 %v853, %v847
        %v855 = vadd.f32 %v854, %v848
        %v856 = vadd.f32 %v855, %v849
        %v857 = vadd.f32 %v856, %v850
        %v858 = vrot.slane %v857, 4
        %v859 = vadd.f32 %v857, %v858
        %v860 = vrot.slane %v859, 2
        %v861 = vadd.f32 %v859, %v860
        %v862 = vrot.slane %v861, 1
        %v863 = vadd.f32 %v861, %v862
        %v864 = vld [vmem:[#allocation2 + $0x3] sm:$0x1]
        %v865 = vadd.f32 %v864, %v842
        %866 = vst [vmem:[#allocation2 + $0x3] sm:$0x1] %v865
        %v867 = vld [vmem:[#allocation3 + $0x3] sm:$0x1]
        %v868 = vadd.f32 %v867, %v863
        %869 = vst [vmem:[#allocation3 + $0x3] sm:$0x1] %v868
        %vm870 = vcmp.eq.s32.totalorder %v547, 4
        %vm871 = vcmp.eq.s32.totalorder %v548, 4
        %vm872 = vcmp.eq.s32.totalorder %v549, 4
        %vm873 = vcmp.eq.s32.totalorder %v550, 4
        %vm874 = vcmp.eq.s32.totalorder %v551, 4
        %vm875 = vcmp.eq.s32.totalorder %v552, 4
        %vm876 = vcmp.eq.s32.totalorder %v553, 4
        %vm877 = vcmp.eq.s32.totalorder %v554, 4
        %vm878 = vmand %vm870, %vm574
        %vm879 = vmand %vm871, %vm575
        %vm880 = vmand %vm872, %vm576
        %vm881 = vmand %vm873, %vm577
        %vm882 = vmand %vm874, %vm578
        %vm883 = vmand %vm875, %vm579
        %vm884 = vmand %vm876, %vm580
        %vm885 = vmand %vm877, %vm581
        %v886 = vsel %vm878, 1, 0
        %v887 = vsel %vm879, 1, 0
        %v888 = vsel %vm880, 1, 0
        %v889 = vsel %vm881, 1, 0
        %v890 = vsel %vm882, 1, 0
        %v891 = vsel %vm883, 1, 0
        %v892 = vsel %vm884, 1, 0
        %v893 = vsel %vm885, 1, 0
        %v894 = vcvt.s32.f32 %v886
        %v895 = vcvt.s32.f32 %v887
        %v896 = vcvt.s32.f32 %v888
        %v897 = vcvt.s32.f32 %v889
        %v898 = vcvt.s32.f32 %v890
        %v899 = vcvt.s32.f32 %v891
        %v900 = vcvt.s32.f32 %v892
        %v901 = vcvt.s32.f32 %v893
        %v902 = vadd.f32 %v894, %v895
        %v903 = vadd.f32 %v902, %v896
        %v904 = vadd.f32 %v903, %v897
        %v905 = vadd.f32 %v904, %v898
        %v906 = vadd.f32 %v905, %v899
        %v907 = vadd.f32 %v906, %v900
        %v908 = vadd.f32 %v907, %v901
        %v909 = vrot.slane %v908, 4
        %v910 = vadd.f32 %v908, %v909
        %v911 = vrot.slane %v910, 2
        %v912 = vadd.f32 %v910, %v911
        %v913 = vrot.slane %v912, 1
        %v914 = vadd.f32 %v912, %v913
        %v915 = vsel %vm878, %v507, 0.0
        %v916 = vsel %vm879, %v508, 0.0
        %v917 = vsel %vm880, %v509, 0.0
        %v918 = vsel %vm881, %v510, 0.0
        %v919 = vsel %vm882, %v511, 0.0
        %v920 = vsel %vm883, %v512, 0.0
        %v921 = vsel %vm884, %v513, 0.0
        %v922 = vsel %vm885, %v514, 0.0
        %v923 = vadd.f32 %v915, %v916
        %v924 = vadd.f32 %v923, %v917
        %v925 = vadd.f32 %v924, %v918
        %v926 = vadd.f32 %v925, %v919
        %v927 = vadd.f32 %v926, %v920
        %v928 = vadd.f32 %v927, %v921
        %v929 = vadd.f32 %v928, %v922
        %v930 = vrot.slane %v929, 4
        %v931 = vadd.f32 %v929, %v930
        %v932 = vrot.slane %v931, 2
        %v933 = vadd.f32 %v931, %v932
        %v934 = vrot.slane %v933, 1
        %v935 = vadd.f32 %v933, %v934
        %v936 = vld [vmem:[#allocation2 + $0x4] sm:$0x1]
        %v937 = vadd.f32 %v936, %v914
        %938 = vst [vmem:[#allocation2 + $0x4] sm:$0x1] %v937
        %v939 = vld [vmem:[#allocation3 + $0x4] sm:$0x1]
        %v940 = vadd.f32 %v939, %v935
        %941 = vst [vmem:[#allocation3 + $0x4] sm:$0x1] %v940
        %vm942 = vcmp.eq.s32.totalorder %v547, 5
        %vm943 = vcmp.eq.s32.totalorder %v548, 5
        %vm944 = vcmp.eq.s32.totalorder %v549, 5
        %vm945 = vcmp.eq.s32.totalorder %v550, 5
        %vm946 = vcmp.eq.s32.totalorder %v551, 5
        %vm947 = vcmp.eq.s32.totalorder %v552, 5
        %vm948 = vcmp.eq.s32.totalorder %v553, 5
        %vm949 = vcmp.eq.s32.totalorder %v554, 5
        %vm950 = vmand %vm942, %vm574
        %vm951 = vmand %vm943, %vm575
        %vm952 = vmand %vm944, %vm576
        %vm953 = vmand %vm945, %vm577
        %vm954 = vmand %vm946, %vm578
        %vm955 = vmand %vm947, %vm579
        %vm956 = vmand %vm948, %vm580
        %vm957 = vmand %vm949, %vm581
        %v958 = vsel %vm950, 1, 0
        %v959 = vsel %vm951, 1, 0
        %v960 = vsel %vm952, 1, 0
        %v961 = vsel %vm953, 1, 0
        %v962 = vsel %vm954, 1, 0
        %v963 = vsel %vm955, 1, 0
        %v964 = vsel %vm956, 1, 0
        %v965 = vsel %vm957, 1, 0
        %v966 = vcvt.s32.f32 %v958
        %v967 = vcvt.s32.f32 %v959
        %v968 = vcvt.s32.f32 %v960
        %v969 = vcvt.s32.f32 %v961
        %v970 = vcvt.s32.f32 %v962
        %v971 = vcvt.s32.f32 %v963
        %v972 = vcvt.s32.f32 %v964
        %v973 = vcvt.s32.f32 %v965
        %v974 = vadd.f32 %v966, %v967
        %v975 = vadd.f32 %v974, %v968
        %v976 = vadd.f32 %v975, %v969
        %v977 = vadd.f32 %v976, %v970
        %v978 = vadd.f32 %v977, %v971
        %v979 = vadd.f32 %v978, %v972
        %v980 = vadd.f32 %v979, %v973
        %v981 = vrot.slane %v980, 4
        %v982 = vadd.f32 %v980, %v981
        %v983 = vrot.slane %v982, 2
        %v984 = vadd.f32 %v982, %v983
        %v985 = vrot.slane %v984, 1
        %v986 = vadd.f32 %v984, %v985
        %v987 = vsel %vm950, %v507, 0.0
        %v988 = vsel %vm951, %v508, 0.0
        %v989 = vsel %vm952, %v509, 0.0
        %v990 = vsel %vm953, %v510, 0.0
        %v991 = vsel %vm954, %v511, 0.0
        %v992 = vsel %vm955, %v512, 0.0
        %v993 = vsel %vm956, %v513, 0.0
        %v994 = vsel %vm957, %v514, 0.0
        %v995 = vadd.f32 %v987, %v988
        %v996 = vadd.f32 %v995, %v989
        %v997 = vadd.f32 %v996, %v990
        %v998 = vadd.f32 %v997, %v991
        %v999 = vadd.f32 %v998, %v992
        %v1000 = vadd.f32 %v999, %v993
        %v1001 = vadd.f32 %v1000, %v994
        %v1002 = vrot.slane %v1001, 4
        %v1003 = vadd.f32 %v1001, %v1002
        %v1004 = vrot.slane %v1003, 2
        %v1005 = vadd.f32 %v1003, %v1004
        %v1006 = vrot.slane %v1005, 1
        %v1007 = vadd.f32 %v1005, %v1006
        %v1008 = vld [vmem:[#allocation2 + $0x5] sm:$0x1]
        %v1009 = vadd.f32 %v1008, %v986
        %1010 = vst [vmem:[#allocation2 + $0x5] sm:$0x1] %v1009
        %v1011 = vld [vmem:[#allocation3 + $0x5] sm:$0x1]
        %v1012 = vadd.f32 %v1011, %v1007
        %1013 = vst [vmem:[#allocation3 + $0x5] sm:$0x1] %v1012
        %vm1014 = vcmp.eq.s32.totalorder %v547, 6
        %vm1015 = vcmp.eq.s32.totalorder %v548, 6
        %vm1016 = vcmp.eq.s32.totalorder %v549, 6
        %vm1017 = vcmp.eq.s32.totalorder %v550, 6
        %vm1018 = vcmp.eq.s32.totalorder %v551, 6
        %vm1019 = vcmp.eq.s32.totalorder %v552, 6
        %vm1020 = vcmp.eq.s32.totalorder %v553, 6
        %vm1021 = vcmp.eq.s32.totalorder %v554, 6
        %vm1022 = vmand %vm1014, %vm574
        %vm1023 = vmand %vm1015, %vm575
        %vm1024 = vmand %vm1016, %vm576
        %vm1025 = vmand %vm1017, %vm577
        %vm1026 = vmand %vm1018, %vm578
        %vm1027 = vmand %vm1019, %vm579
        %vm1028 = vmand %vm1020, %vm580
        %vm1029 = vmand %vm1021, %vm581
        %v1030 = vsel %vm1022, 1, 0
        %v1031 = vsel %vm1023, 1, 0
        %v1032 = vsel %vm1024, 1, 0
        %v1033 = vsel %vm1025, 1, 0
        %v1034 = vsel %vm1026, 1, 0
        %v1035 = vsel %vm1027, 1, 0
        %v1036 = vsel %vm1028, 1, 0
        %v1037 = vsel %vm1029, 1, 0
        %v1038 = vcvt.s32.f32 %v1030
        %v1039 = vcvt.s32.f32 %v1031
        %v1040 = vcvt.s32.f32 %v1032
        %v1041 = vcvt.s32.f32 %v1033
        %v1042 = vcvt.s32.f32 %v1034
        %v1043 = vcvt.s32.f32 %v1035
        %v1044 = vcvt.s32.f32 %v1036
        %v1045 = vcvt.s32.f32 %v1037
        %v1046 = vadd.f32 %v1038, %v1039
        %v1047 = vadd.f32 %v1046, %v1040
        %v1048 = vadd.f32 %v1047, %v1041
        %v1049 = vadd.f32 %v1048, %v1042
        %v1050 = vadd.f32 %v1049, %v1043
        %v1051 = vadd.f32 %v1050, %v1044
        %v1052 = vadd.f32 %v1051, %v1045
        %v1053 = vrot.slane %v1052, 4
        %v1054 = vadd.f32 %v1052, %v1053
        %v1055 = vrot.slane %v1054, 2
        %v1056 = vadd.f32 %v1054, %v1055
        %v1057 = vrot.slane %v1056, 1
        %v1058 = vadd.f32 %v1056, %v1057
        %v1059 = vsel %vm1022, %v507, 0.0
        %v1060 = vsel %vm1023, %v508, 0.0
        %v1061 = vsel %vm1024, %v509, 0.0
        %v1062 = vsel %vm1025, %v510, 0.0
        %v1063 = vsel %vm1026, %v511, 0.0
        %v1064 = vsel %vm1027, %v512, 0.0
        %v1065 = vsel %vm1028, %v513, 0.0
        %v1066 = vsel %vm1029, %v514, 0.0
        %v1067 = vadd.f32 %v1059, %v1060
        %v1068 = vadd.f32 %v1067, %v1061
        %v1069 = vadd.f32 %v1068, %v1062
        %v1070 = vadd.f32 %v1069, %v1063
        %v1071 = vadd.f32 %v1070, %v1064
        %v1072 = vadd.f32 %v1071, %v1065
        %v1073 = vadd.f32 %v1072, %v1066
        %v1074 = vrot.slane %v1073, 4
        %v1075 = vadd.f32 %v1073, %v1074
        %v1076 = vrot.slane %v1075, 2
        %v1077 = vadd.f32 %v1075, %v1076
        %v1078 = vrot.slane %v1077, 1
        %v1079 = vadd.f32 %v1077, %v1078
        %v1080 = vld [vmem:[#allocation2 + $0x6] sm:$0x1]
        %v1081 = vadd.f32 %v1080, %v1058
        %1082 = vst [vmem:[#allocation2 + $0x6] sm:$0x1] %v1081
        %v1083 = vld [vmem:[#allocation3 + $0x6] sm:$0x1]
        %v1084 = vadd.f32 %v1083, %v1079
        %1085 = vst [vmem:[#allocation3 + $0x6] sm:$0x1] %v1084
        %vm1086 = vcmp.eq.s32.totalorder %v547, 7
        %vm1087 = vcmp.eq.s32.totalorder %v548, 7
        %vm1088 = vcmp.eq.s32.totalorder %v549, 7
        %vm1089 = vcmp.eq.s32.totalorder %v550, 7
        %vm1090 = vcmp.eq.s32.totalorder %v551, 7
        %vm1091 = vcmp.eq.s32.totalorder %v552, 7
        %vm1092 = vcmp.eq.s32.totalorder %v553, 7
        %vm1093 = vcmp.eq.s32.totalorder %v554, 7
        %vm1094 = vmand %vm1086, %vm574
        %vm1095 = vmand %vm1087, %vm575
        %vm1096 = vmand %vm1088, %vm576
        %vm1097 = vmand %vm1089, %vm577
        %vm1098 = vmand %vm1090, %vm578
        %vm1099 = vmand %vm1091, %vm579
        %vm1100 = vmand %vm1092, %vm580
        %vm1101 = vmand %vm1093, %vm581
        %v1102 = vsel %vm1094, 1, 0
        %v1103 = vsel %vm1095, 1, 0
        %v1104 = vsel %vm1096, 1, 0
        %v1105 = vsel %vm1097, 1, 0
        %v1106 = vsel %vm1098, 1, 0
        %v1107 = vsel %vm1099, 1, 0
        %v1108 = vsel %vm1100, 1, 0
        %v1109 = vsel %vm1101, 1, 0
        %v1110 = vcvt.s32.f32 %v1102
        %v1111 = vcvt.s32.f32 %v1103
        %v1112 = vcvt.s32.f32 %v1104
        %v1113 = vcvt.s32.f32 %v1105
        %v1114 = vcvt.s32.f32 %v1106
        %v1115 = vcvt.s32.f32 %v1107
        %v1116 = vcvt.s32.f32 %v1108
        %v1117 = vcvt.s32.f32 %v1109
        %v1118 = vadd.f32 %v1110, %v1111
        %v1119 = vadd.f32 %v1118, %v1112
        %v1120 = vadd.f32 %v1119, %v1113
        %v1121 = vadd.f32 %v1120, %v1114
        %v1122 = vadd.f32 %v1121, %v1115
        %v1123 = vadd.f32 %v1122, %v1116
        %v1124 = vadd.f32 %v1123, %v1117
        %v1125 = vrot.slane %v1124, 4
        %v1126 = vadd.f32 %v1124, %v1125
        %v1127 = vrot.slane %v1126, 2
        %v1128 = vadd.f32 %v1126, %v1127
        %v1129 = vrot.slane %v1128, 1
        %v1130 = vadd.f32 %v1128, %v1129
        %v1131 = vsel %vm1094, %v507, 0.0
        %v1132 = vsel %vm1095, %v508, 0.0
        %v1133 = vsel %vm1096, %v509, 0.0
        %v1134 = vsel %vm1097, %v510, 0.0
        %v1135 = vsel %vm1098, %v511, 0.0
        %v1136 = vsel %vm1099, %v512, 0.0
        %v1137 = vsel %vm1100, %v513, 0.0
        %v1138 = vsel %vm1101, %v514, 0.0
        %v1139 = vadd.f32 %v1131, %v1132
        %v1140 = vadd.f32 %v1139, %v1133
        %v1141 = vadd.f32 %v1140, %v1134
        %v1142 = vadd.f32 %v1141, %v1135
        %v1143 = vadd.f32 %v1142, %v1136
        %v1144 = vadd.f32 %v1143, %v1137
        %v1145 = vadd.f32 %v1144, %v1138
        %v1146 = vrot.slane %v1145, 4
        %v1147 = vadd.f32 %v1145, %v1146
        %v1148 = vrot.slane %v1147, 2
        %v1149 = vadd.f32 %v1147, %v1148
        %v1150 = vrot.slane %v1149, 1
        %v1151 = vadd.f32 %v1149, %v1150
        %v1152 = vld [vmem:[#allocation2 + $0x7] sm:$0x1]
        %v1153 = vadd.f32 %v1152, %v1130
        %1154 = vst [vmem:[#allocation2 + $0x7] sm:$0x1] %v1153
        %v1155 = vld [vmem:[#allocation3 + $0x7] sm:$0x1]
        %v1156 = vadd.f32 %v1155, %v1151
        %1157 = vst [vmem:[#allocation3 + $0x7] sm:$0x1] %v1156
        %vm1158 = vcmp.eq.s32.totalorder %v547, 8
        %vm1159 = vcmp.eq.s32.totalorder %v548, 8
        %vm1160 = vcmp.eq.s32.totalorder %v549, 8
        %vm1161 = vcmp.eq.s32.totalorder %v550, 8
        %vm1162 = vcmp.eq.s32.totalorder %v551, 8
        %vm1163 = vcmp.eq.s32.totalorder %v552, 8
        %vm1164 = vcmp.eq.s32.totalorder %v553, 8
        %vm1165 = vcmp.eq.s32.totalorder %v554, 8
        %vm1166 = vmand %vm1158, %vm574
        %vm1167 = vmand %vm1159, %vm575
        %vm1168 = vmand %vm1160, %vm576
        %vm1169 = vmand %vm1161, %vm577
        %vm1170 = vmand %vm1162, %vm578
        %vm1171 = vmand %vm1163, %vm579
        %vm1172 = vmand %vm1164, %vm580
        %vm1173 = vmand %vm1165, %vm581
        %v1174 = vsel %vm1166, 1, 0
        %v1175 = vsel %vm1167, 1, 0
        %v1176 = vsel %vm1168, 1, 0
        %v1177 = vsel %vm1169, 1, 0
        %v1178 = vsel %vm1170, 1, 0
        %v1179 = vsel %vm1171, 1, 0
        %v1180 = vsel %vm1172, 1, 0
        %v1181 = vsel %vm1173, 1, 0
        %v1182 = vcvt.s32.f32 %v1174
        %v1183 = vcvt.s32.f32 %v1175
        %v1184 = vcvt.s32.f32 %v1176
        %v1185 = vcvt.s32.f32 %v1177
        %v1186 = vcvt.s32.f32 %v1178
        %v1187 = vcvt.s32.f32 %v1179
        %v1188 = vcvt.s32.f32 %v1180
        %v1189 = vcvt.s32.f32 %v1181
        %v1190 = vadd.f32 %v1182, %v1183
        %v1191 = vadd.f32 %v1190, %v1184
        %v1192 = vadd.f32 %v1191, %v1185
        %v1193 = vadd.f32 %v1192, %v1186
        %v1194 = vadd.f32 %v1193, %v1187
        %v1195 = vadd.f32 %v1194, %v1188
        %v1196 = vadd.f32 %v1195, %v1189
        %v1197 = vrot.slane %v1196, 4
        %v1198 = vadd.f32 %v1196, %v1197
        %v1199 = vrot.slane %v1198, 2
        %v1200 = vadd.f32 %v1198, %v1199
        %v1201 = vrot.slane %v1200, 1
        %v1202 = vadd.f32 %v1200, %v1201
        %v1203 = vsel %vm1166, %v507, 0.0
        %v1204 = vsel %vm1167, %v508, 0.0
        %v1205 = vsel %vm1168, %v509, 0.0
        %v1206 = vsel %vm1169, %v510, 0.0
        %v1207 = vsel %vm1170, %v511, 0.0
        %v1208 = vsel %vm1171, %v512, 0.0
        %v1209 = vsel %vm1172, %v513, 0.0
        %v1210 = vsel %vm1173, %v514, 0.0
        %v1211 = vadd.f32 %v1203, %v1204
        %v1212 = vadd.f32 %v1211, %v1205
        %v1213 = vadd.f32 %v1212, %v1206
        %v1214 = vadd.f32 %v1213, %v1207
        %v1215 = vadd.f32 %v1214, %v1208
        %v1216 = vadd.f32 %v1215, %v1209
        %v1217 = vadd.f32 %v1216, %v1210
        %v1218 = vrot.slane %v1217, 4
        %v1219 = vadd.f32 %v1217, %v1218
        %v1220 = vrot.slane %v1219, 2
        %v1221 = vadd.f32 %v1219, %v1220
        %v1222 = vrot.slane %v1221, 1
        %v1223 = vadd.f32 %v1221, %v1222
        %v1224 = vld [vmem:[#allocation2 + $0x8] sm:$0x1]
        %v1225 = vadd.f32 %v1224, %v1202
        %1226 = vst [vmem:[#allocation2 + $0x8] sm:$0x1] %v1225
        %v1227 = vld [vmem:[#allocation3 + $0x8] sm:$0x1]
        %v1228 = vadd.f32 %v1227, %v1223
        %1229 = vst [vmem:[#allocation3 + $0x8] sm:$0x1] %v1228
        %vm1230 = vcmp.eq.s32.totalorder %v547, 9
        %vm1231 = vcmp.eq.s32.totalorder %v548, 9
        %vm1232 = vcmp.eq.s32.totalorder %v549, 9
        %vm1233 = vcmp.eq.s32.totalorder %v550, 9
        %vm1234 = vcmp.eq.s32.totalorder %v551, 9
        %vm1235 = vcmp.eq.s32.totalorder %v552, 9
        %vm1236 = vcmp.eq.s32.totalorder %v553, 9
        %vm1237 = vcmp.eq.s32.totalorder %v554, 9
        %vm1238 = vmand %vm1230, %vm574
        %vm1239 = vmand %vm1231, %vm575
        %vm1240 = vmand %vm1232, %vm576
        %vm1241 = vmand %vm1233, %vm577
        %vm1242 = vmand %vm1234, %vm578
        %vm1243 = vmand %vm1235, %vm579
        %vm1244 = vmand %vm1236, %vm580
        %vm1245 = vmand %vm1237, %vm581
        %v1246 = vsel %vm1238, 1, 0
        %v1247 = vsel %vm1239, 1, 0
        %v1248 = vsel %vm1240, 1, 0
        %v1249 = vsel %vm1241, 1, 0
        %v1250 = vsel %vm1242, 1, 0
        %v1251 = vsel %vm1243, 1, 0
        %v1252 = vsel %vm1244, 1, 0
        %v1253 = vsel %vm1245, 1, 0
        %v1254 = vcvt.s32.f32 %v1246
        %v1255 = vcvt.s32.f32 %v1247
        %v1256 = vcvt.s32.f32 %v1248
        %v1257 = vcvt.s32.f32 %v1249
        %v1258 = vcvt.s32.f32 %v1250
        %v1259 = vcvt.s32.f32 %v1251
        %v1260 = vcvt.s32.f32 %v1252
        %v1261 = vcvt.s32.f32 %v1253
        %v1262 = vadd.f32 %v1254, %v1255
        %v1263 = vadd.f32 %v1262, %v1256
        %v1264 = vadd.f32 %v1263, %v1257
        %v1265 = vadd.f32 %v1264, %v1258
        %v1266 = vadd.f32 %v1265, %v1259
        %v1267 = vadd.f32 %v1266, %v1260
        %v1268 = vadd.f32 %v1267, %v1261
        %v1269 = vrot.slane %v1268, 4
        %v1270 = vadd.f32 %v1268, %v1269
        %v1271 = vrot.slane %v1270, 2
        %v1272 = vadd.f32 %v1270, %v1271
        %v1273 = vrot.slane %v1272, 1
        %v1274 = vadd.f32 %v1272, %v1273
        %v1275 = vsel %vm1238, %v507, 0.0
        %v1276 = vsel %vm1239, %v508, 0.0
        %v1277 = vsel %vm1240, %v509, 0.0
        %v1278 = vsel %vm1241, %v510, 0.0
        %v1279 = vsel %vm1242, %v511, 0.0
        %v1280 = vsel %vm1243, %v512, 0.0
        %v1281 = vsel %vm1244, %v513, 0.0
        %v1282 = vsel %vm1245, %v514, 0.0
        %v1283 = vadd.f32 %v1275, %v1276
        %v1284 = vadd.f32 %v1283, %v1277
        %v1285 = vadd.f32 %v1284, %v1278
        %v1286 = vadd.f32 %v1285, %v1279
        %v1287 = vadd.f32 %v1286, %v1280
        %v1288 = vadd.f32 %v1287, %v1281
        %v1289 = vadd.f32 %v1288, %v1282
        %v1290 = vrot.slane %v1289, 4
        %v1291 = vadd.f32 %v1289, %v1290
        %v1292 = vrot.slane %v1291, 2
        %v1293 = vadd.f32 %v1291, %v1292
        %v1294 = vrot.slane %v1293, 1
        %v1295 = vadd.f32 %v1293, %v1294
        %v1296 = vld [vmem:[#allocation2 + $0x9] sm:$0x1]
        %v1297 = vadd.f32 %v1296, %v1274
        %1298 = vst [vmem:[#allocation2 + $0x9] sm:$0x1] %v1297
        %v1299 = vld [vmem:[#allocation3 + $0x9] sm:$0x1]
        %v1300 = vadd.f32 %v1299, %v1295
        %1301 = vst [vmem:[#allocation3 + $0x9] sm:$0x1] %v1300
        %p1302 = scmp.eq.s32.totalorder %s27, 3
        // Predicated region
        $region53: #{tpu_custom_call.1} parent=35 // pred_check
          %p1303 = pneg %p1302
        $region54: #{tpu_custom_call.1} parent=35 // pred_check_branch
          %1305 = sbr.rel (%p1303) target = $region56
        $region55: #{tpu_custom_call.1} parent=35 // pred_region
          %s1306 = sld [smem:[#allocation4]]
          %v1307 = vld [vmem:[#allocation2] sm:$0x1]
          %vm1308 = vcmask 1040384
          %v1309 = vsel %vm1308, %v1307, 0.0
          %1310 = vadd.xlane.f32.xlu0 %v1309
          %v1311 = vpop.xlane.xlu0 %1310
          %v1312 = vrot.slane %v1311, 4
          %v1313 = vadd.f32 %v1311, %v1312
          %v1314 = vrot.slane %v1313, 2
          %v1315 = vadd.f32 %v1313, %v1314
          %v1316 = vrot.slane %v1315, 1
          %v1317 = vadd.f32 %v1315, %v1316
          %s1318 = vtos %v1317
          %p1319 = scmp.gt.s32.totalorder %s1306, 0
          %s1320 = sld [smem:[#allocation5]]
          %s1321 = smul.f32 %s1320, 0.5
          %s1322 = smul.f32 %s1318, 0.5
          %s1323 = sadd.f32 %s1321, %s1322
          %s1324 = scalar_select %p1319, %s1323, %s1318
          %s1325 = scalar_lea.smem [#allocation13], 0
          %1326 = sst [smem:[%s1325]] %s1324
          %v1327 = vld [vmem:[#allocation3] sm:$0x1]
          %v1328 = vsel %vm1308, %v1327, 0.0
          %1329 = vadd.xlane.f32.xlu0 %v1328
          %v1330 = vpop.xlane.xlu0 %1329
          %v1331 = vrot.slane %v1330, 4
          %v1332 = vadd.f32 %v1330, %v1331
          %v1333 = vrot.slane %v1332, 2
          %v1334 = vadd.f32 %v1332, %v1333
          %v1335 = vrot.slane %v1334, 1
          %v1336 = vadd.f32 %v1334, %v1335
          %s1337 = vtos %v1336
          %v1338 = vld [vmem:[#allocation2 + $0x1] sm:$0x1]
          %v1339 = vsel %vm1308, %v1338, 0.0
          %1340 = vadd.xlane.f32.xlu0 %v1339
          %v1341 = vpop.xlane.xlu0 %1340
          %v1342 = vrot.slane %v1341, 4
          %v1343 = vadd.f32 %v1341, %v1342
          %v1344 = vrot.slane %v1343, 2
          %v1345 = vadd.f32 %v1343, %v1344
          %v1346 = vrot.slane %v1345, 1
          %v1347 = vadd.f32 %v1345, %v1346
          %s1348 = vtos %v1347
          %s1349 = sld [smem:[#allocation5 + $0x1]]
          %s1350 = smul.f32 %s1349, 0.5
          %s1351 = smul.f32 %s1348, 0.5
          %s1352 = sadd.f32 %s1350, %s1351
          %s1353 = scalar_select %p1319, %s1352, %s1348
          %s1354 = scalar_lea.smem [#allocation13], 1
          %1355 = sst [smem:[%s1354]] %s1353
          %v1356 = vld [vmem:[#allocation3 + $0x1] sm:$0x1]
          %v1357 = vsel %vm1308, %v1356, 0.0
          %1358 = vadd.xlane.f32.xlu0 %v1357
          %v1359 = vpop.xlane.xlu0 %1358
          %v1360 = vrot.slane %v1359, 4
          %v1361 = vadd.f32 %v1359, %v1360
          %v1362 = vrot.slane %v1361, 2
          %v1363 = vadd.f32 %v1361, %v1362
          %v1364 = vrot.slane %v1363, 1
          %v1365 = vadd.f32 %v1363, %v1364
          %s1366 = vtos %v1365
          %v1367 = vld [vmem:[#allocation2 + $0x2] sm:$0x1]
          %v1368 = vsel %vm1308, %v1367, 0.0
          %1369 = vadd.xlane.f32.xlu0 %v1368
          %v1370 = vpop.xlane.xlu0 %1369
          %v1371 = vrot.slane %v1370, 4
          %v1372 = vadd.f32 %v1370, %v1371
          %v1373 = vrot.slane %v1372, 2
          %v1374 = vadd.f32 %v1372, %v1373
          %v1375 = vrot.slane %v1374, 1
          %v1376 = vadd.f32 %v1374, %v1375
          %s1377 = vtos %v1376
          %s1378 = sld [smem:[#allocation5 + $0x2]]
          %s1379 = smul.f32 %s1378, 0.5
          %s1380 = smul.f32 %s1377, 0.5
          %s1381 = sadd.f32 %s1379, %s1380
          %s1382 = scalar_select %p1319, %s1381, %s1377
          %s1383 = scalar_lea.smem [#allocation13], 2
          %1384 = sst [smem:[%s1383]] %s1382
          %v1385 = vld [vmem:[#allocation3 + $0x2] sm:$0x1]
          %v1386 = vsel %vm1308, %v1385, 0.0
          %1387 = vadd.xlane.f32.xlu0 %v1386
          %v1388 = vpop.xlane.xlu0 %1387
          %v1389 = vrot.slane %v1388, 4
          %v1390 = vadd.f32 %v1388, %v1389
          %v1391 = vrot.slane %v1390, 2
          %v1392 = vadd.f32 %v1390, %v1391
          %v1393 = vrot.slane %v1392, 1
          %v1394 = vadd.f32 %v1392, %v1393
          %s1395 = vtos %v1394
          %v1396 = vld [vmem:[#allocation2 + $0x3] sm:$0x1]
          %v1397 = vsel %vm1308, %v1396, 0.0
          %1398 = vadd.xlane.f32.xlu0 %v1397
          %v1399 = vpop.xlane.xlu0 %1398
          %v1400 = vrot.slane %v1399, 4
          %v1401 = vadd.f32 %v1399, %v1400
          %v1402 = vrot.slane %v1401, 2
          %v1403 = vadd.f32 %v1401, %v1402
          %v1404 = vrot.slane %v1403, 1
          %v1405 = vadd.f32 %v1403, %v1404
          %s1406 = vtos %v1405
          %s1407 = sld [smem:[#allocation5 + $0x3]]
          %s1408 = smul.f32 %s1407, 0.5
          %s1409 = smul.f32 %s1406, 0.5
          %s1410 = sadd.f32 %s1408, %s1409
          %s1411 = scalar_select %p1319, %s1410, %s1406
          %s1412 = scalar_lea.smem [#allocation13], 3
          %1413 = sst [smem:[%s1412]] %s1411
          %v1414 = vld [vmem:[#allocation3 + $0x3] sm:$0x1]
          %v1415 = vsel %vm1308, %v1414, 0.0
          %1416 = vadd.xlane.f32.xlu0 %v1415
          %v1417 = vpop.xlane.xlu0 %1416
          %v1418 = vrot.slane %v1417, 4
          %v1419 = vadd.f32 %v1417, %v1418
          %v1420 = vrot.slane %v1419, 2
          %v1421 = vadd.f32 %v1419, %v1420
          %v1422 = vrot.slane %v1421, 1
          %v1423 = vadd.f32 %v1421, %v1422
          %s1424 = vtos %v1423
          %v1425 = vld [vmem:[#allocation2 + $0x4] sm:$0x1]
          %v1426 = vsel %vm1308, %v1425, 0.0
          %1427 = vadd.xlane.f32.xlu0 %v1426
          %v1428 = vpop.xlane.xlu0 %1427
          %v1429 = vrot.slane %v1428, 4
          %v1430 = vadd.f32 %v1428, %v1429
          %v1431 = vrot.slane %v1430, 2
          %v1432 = vadd.f32 %v1430, %v1431
          %v1433 = vrot.slane %v1432, 1
          %v1434 = vadd.f32 %v1432, %v1433
          %s1435 = vtos %v1434
          %s1436 = sld [smem:[#allocation5 + $0x4]]
          %s1437 = smul.f32 %s1436, 0.5
          %s1438 = smul.f32 %s1435, 0.5
          %s1439 = sadd.f32 %s1437, %s1438
          %s1440 = scalar_select %p1319, %s1439, %s1435
          %s1441 = scalar_lea.smem [#allocation13], 4
          %1442 = sst [smem:[%s1441]] %s1440
          %v1443 = vld [vmem:[#allocation3 + $0x4] sm:$0x1]
          %v1444 = vsel %vm1308, %v1443, 0.0
          %1445 = vadd.xlane.f32.xlu0 %v1444
          %v1446 = vpop.xlane.xlu0 %1445
          %v1447 = vrot.slane %v1446, 4
          %v1448 = vadd.f32 %v1446, %v1447
          %v1449 = vrot.slane %v1448, 2
          %v1450 = vadd.f32 %v1448, %v1449
          %v1451 = vrot.slane %v1450, 1
          %v1452 = vadd.f32 %v1450, %v1451
          %s1453 = vtos %v1452
          %v1454 = vld [vmem:[#allocation2 + $0x5] sm:$0x1]
          %v1455 = vsel %vm1308, %v1454, 0.0
          %1456 = vadd.xlane.f32.xlu0 %v1455
          %v1457 = vpop.xlane.xlu0 %1456
          %v1458 = vrot.slane %v1457, 4
          %v1459 = vadd.f32 %v1457, %v1458
          %v1460 = vrot.slane %v1459, 2
          %v1461 = vadd.f32 %v1459, %v1460
          %v1462 = vrot.slane %v1461, 1
          %v1463 = vadd.f32 %v1461, %v1462
          %s1464 = vtos %v1463
          %s1465 = sld [smem:[#allocation5 + $0x5]]
          %s1466 = smul.f32 %s1465, 0.5
          %s1467 = smul.f32 %s1464, 0.5
          %s1468 = sadd.f32 %s1466, %s1467
          %s1469 = scalar_select %p1319, %s1468, %s1464
          %s1470 = scalar_lea.smem [#allocation13], 5
          %1471 = sst [smem:[%s1470]] %s1469
          %v1472 = vld [vmem:[#allocation3 + $0x5] sm:$0x1]
          %v1473 = vsel %vm1308, %v1472, 0.0
          %1474 = vadd.xlane.f32.xlu0 %v1473
          %v1475 = vpop.xlane.xlu0 %1474
          %v1476 = vrot.slane %v1475, 4
          %v1477 = vadd.f32 %v1475, %v1476
          %v1478 = vrot.slane %v1477, 2
          %v1479 = vadd.f32 %v1477, %v1478
          %v1480 = vrot.slane %v1479, 1
          %v1481 = vadd.f32 %v1479, %v1480
          %s1482 = vtos %v1481
          %v1483 = vld [vmem:[#allocation2 + $0x6] sm:$0x1]
          %v1484 = vsel %vm1308, %v1483, 0.0
          %1485 = vadd.xlane.f32.xlu0 %v1484
          %v1486 = vpop.xlane.xlu0 %1485
          %v1487 = vrot.slane %v1486, 4
          %v1488 = vadd.f32 %v1486, %v1487
          %v1489 = vrot.slane %v1488, 2
          %v1490 = vadd.f32 %v1488, %v1489
          %v1491 = vrot.slane %v1490, 1
          %v1492 = vadd.f32 %v1490, %v1491
          %s1493 = vtos %v1492
          %s1494 = sld [smem:[#allocation5 + $0x6]]
          %s1495 = smul.f32 %s1494, 0.5
          %s1496 = smul.f32 %s1493, 0.5
          %s1497 = sadd.f32 %s1495, %s1496
          %s1498 = scalar_select %p1319, %s1497, %s1493
          %s1499 = scalar_lea.smem [#allocation13], 6
          %1500 = sst [smem:[%s1499]] %s1498
          %v1501 = vld [vmem:[#allocation3 + $0x6] sm:$0x1]
          %v1502 = vsel %vm1308, %v1501, 0.0
          %1503 = vadd.xlane.f32.xlu0 %v1502
          %v1504 = vpop.xlane.xlu0 %1503
          %v1505 = vrot.slane %v1504, 4
          %v1506 = vadd.f32 %v1504, %v1505
          %v1507 = vrot.slane %v1506, 2
          %v1508 = vadd.f32 %v1506, %v1507
          %v1509 = vrot.slane %v1508, 1
          %v1510 = vadd.f32 %v1508, %v1509
          %s1511 = vtos %v1510
          %v1512 = vld [vmem:[#allocation2 + $0x7] sm:$0x1]
          %v1513 = vsel %vm1308, %v1512, 0.0
          %1514 = vadd.xlane.f32.xlu0 %v1513
          %v1515 = vpop.xlane.xlu0 %1514
          %v1516 = vrot.slane %v1515, 4
          %v1517 = vadd.f32 %v1515, %v1516
          %v1518 = vrot.slane %v1517, 2
          %v1519 = vadd.f32 %v1517, %v1518
          %v1520 = vrot.slane %v1519, 1
          %v1521 = vadd.f32 %v1519, %v1520
          %s1522 = vtos %v1521
          %s1523 = sld [smem:[#allocation5 + $0x7]]
          %s1524 = smul.f32 %s1523, 0.5
          %s1525 = smul.f32 %s1522, 0.5
          %s1526 = sadd.f32 %s1524, %s1525
          %s1527 = scalar_select %p1319, %s1526, %s1522
          %s1528 = scalar_lea.smem [#allocation13], 7
          %1529 = sst [smem:[%s1528]] %s1527
          %v1530 = vld [vmem:[#allocation3 + $0x7] sm:$0x1]
          %v1531 = vsel %vm1308, %v1530, 0.0
          %1532 = vadd.xlane.f32.xlu0 %v1531
          %v1533 = vpop.xlane.xlu0 %1532
          %v1534 = vrot.slane %v1533, 4
          %v1535 = vadd.f32 %v1533, %v1534
          %v1536 = vrot.slane %v1535, 2
          %v1537 = vadd.f32 %v1535, %v1536
          %v1538 = vrot.slane %v1537, 1
          %v1539 = vadd.f32 %v1537, %v1538
          %s1540 = vtos %v1539
          %v1541 = vld [vmem:[#allocation2 + $0x8] sm:$0x1]
          %v1542 = vsel %vm1308, %v1541, 0.0
          %1543 = vadd.xlane.f32.xlu0 %v1542
          %v1544 = vpop.xlane.xlu0 %1543
          %v1545 = vrot.slane %v1544, 4
          %v1546 = vadd.f32 %v1544, %v1545
          %v1547 = vrot.slane %v1546, 2
          %v1548 = vadd.f32 %v1546, %v1547
          %v1549 = vrot.slane %v1548, 1
          %v1550 = vadd.f32 %v1548, %v1549
          %s1551 = vtos %v1550
          %s1552 = sld [smem:[#allocation5 + $0x8]]
          %s1553 = smul.f32 %s1552, 0.5
          %s1554 = smul.f32 %s1551, 0.5
          %s1555 = sadd.f32 %s1553, %s1554
          %s1556 = scalar_select %p1319, %s1555, %s1551
          %s1557 = scalar_lea.smem [#allocation13], 8
          %1558 = sst [smem:[%s1557]] %s1556
          %v1559 = vld [vmem:[#allocation3 + $0x8] sm:$0x1]
          %v1560 = vsel %vm1308, %v1559, 0.0
          %1561 = vadd.xlane.f32.xlu0 %v1560
          %v1562 = vpop.xlane.xlu0 %1561
          %v1563 = vrot.slane %v1562, 4
          %v1564 = vadd.f32 %v1562, %v1563
          %v1565 = vrot.slane %v1564, 2
          %v1566 = vadd.f32 %v1564, %v1565
          %v1567 = vrot.slane %v1566, 1
          %v1568 = vadd.f32 %v1566, %v1567
          %s1569 = vtos %v1568
          %v1570 = vld [vmem:[#allocation2 + $0x9] sm:$0x1]
          %v1571 = vsel %vm1308, %v1570, 0.0
          %1572 = vadd.xlane.f32.xlu0 %v1571
          %v1573 = vpop.xlane.xlu0 %1572
          %v1574 = vrot.slane %v1573, 4
          %v1575 = vadd.f32 %v1573, %v1574
          %v1576 = vrot.slane %v1575, 2
          %v1577 = vadd.f32 %v1575, %v1576
          %v1578 = vrot.slane %v1577, 1
          %v1579 = vadd.f32 %v1577, %v1578
          %s1580 = vtos %v1579
          %s1581 = sld [smem:[#allocation5 + $0x9]]
          %s1582 = smul.f32 %s1581, 0.5
          %s1583 = smul.f32 %s1580, 0.5
          %s1584 = sadd.f32 %s1582, %s1583
          %s1585 = scalar_select %p1319, %s1584, %s1580
          %s1586 = scalar_lea.smem [#allocation13], 9
          %1587 = sst [smem:[%s1586]] %s1585
          %v1588 = vld [vmem:[#allocation3 + $0x9] sm:$0x1]
          %v1589 = vsel %vm1308, %v1588, 0.0
          %1590 = vadd.xlane.f32.xlu0 %v1589
          %v1591 = vpop.xlane.xlu0 %1590
          %v1592 = vrot.slane %v1591, 4
          %v1593 = vadd.f32 %v1591, %v1592
          %v1594 = vrot.slane %v1593, 2
          %v1595 = vadd.f32 %v1593, %v1594
          %v1596 = vrot.slane %v1595, 1
          %v1597 = vadd.f32 %v1595, %v1596
          %s1598 = vtos %v1597
          %p1599 = scmp.gt.f32.partialorder %s1324, 0.0
          %s1600 = scalar_select %p1599, 1, 0
          %s1601 = scvt.s32.f32 %s1600
          %s1602 = sadd.f32 %s1601, 0.0
          %p1603 = scmp.gt.f32.partialorder %s1353, 0.0
          %s1604 = scalar_select %p1603, 1, 0
          %s1605 = scvt.s32.f32 %s1604
          %s1606 = sadd.f32 %s1602, %s1605
          %p1607 = scmp.gt.f32.partialorder %s1382, 0.0
          %s1608 = scalar_select %p1607, 1, 0
          %s1609 = scvt.s32.f32 %s1608
          %s1610 = sadd.f32 %s1606, %s1609
          %p1611 = scmp.gt.f32.partialorder %s1411, 0.0
          %s1612 = scalar_select %p1611, 1, 0
          %s1613 = scvt.s32.f32 %s1612
          %s1614 = sadd.f32 %s1610, %s1613
          %p1615 = scmp.gt.f32.partialorder %s1440, 0.0
          %s1616 = scalar_select %p1615, 1, 0
          %s1617 = scvt.s32.f32 %s1616
          %s1618 = sadd.f32 %s1614, %s1617
          %p1619 = scmp.gt.f32.partialorder %s1469, 0.0
          %s1620 = scalar_select %p1619, 1, 0
          %s1621 = scvt.s32.f32 %s1620
          %s1622 = sadd.f32 %s1618, %s1621
          %p1623 = scmp.gt.f32.partialorder %s1498, 0.0
          %s1624 = scalar_select %p1623, 1, 0
          %s1625 = scvt.s32.f32 %s1624
          %s1626 = sadd.f32 %s1622, %s1625
          %p1627 = scmp.gt.f32.partialorder %s1527, 0.0
          %s1628 = scalar_select %p1627, 1, 0
          %s1629 = scvt.s32.f32 %s1628
          %s1630 = sadd.f32 %s1626, %s1629
          %p1631 = scmp.gt.f32.partialorder %s1556, 0.0
          %s1632 = scalar_select %p1631, 1, 0
          %s1633 = scvt.s32.f32 %s1632
          %s1634 = sadd.f32 %s1630, %s1633
          %p1635 = scmp.gt.f32.partialorder %s1585, 0.0
          %s1636 = scalar_select %p1635, 1, 0
          %s1637 = scvt.s32.f32 %s1636
          %s1638 = sadd.f32 %s1634, %s1637
          %s1639 = smul.f32 %s1324, %s1638
          %s1640 = smax.f32 %s1639, 0.0001
          %v1641 = vstv %s1640
          %v1642 = vrcp.pop %v1641
          %s1643 = vtos %v1642
          %s1644 = smul.f32 25600.0, %s1643
          %s1645 = smul.f32 %s1337, %s1644
          %s1646 = sadd.f32 %s1645, 0.0
          %s1647 = smul.f32 %s1353, %s1638
          %s1648 = smax.f32 %s1647, 0.0001
          %v1649 = vstv %s1648
          %v1650 = vrcp.pop %v1649
          %s1651 = vtos %v1650
          %s1652 = smul.f32 25600.0, %s1651
          %s1653 = smul.f32 %s1366, %s1652
          %s1654 = sadd.f32 %s1646, %s1653
          %s1655 = smul.f32 %s1382, %s1638
          %s1656 = smax.f32 %s1655, 0.0001
          %v1657 = vstv %s1656
          %v1658 = vrcp.pop %v1657
          %s1659 = vtos %v1658
          %s1660 = smul.f32 25600.0, %s1659
          %s1661 = smul.f32 %s1395, %s1660
          %s1662 = sadd.f32 %s1654, %s1661
          %s1663 = smul.f32 %s1411, %s1638
          %s1664 = smax.f32 %s1663, 0.0001
          %v1665 = vstv %s1664
          %v1666 = vrcp.pop %v1665
          %s1667 = vtos %v1666
          %s1668 = smul.f32 25600.0, %s1667
          %s1669 = smul.f32 %s1424, %s1668
          %s1670 = sadd.f32 %s1662, %s1669
          %s1671 = smul.f32 %s1440, %s1638
          %s1672 = smax.f32 %s1671, 0.0001
          %v1673 = vstv %s1672
          %v1674 = vrcp.pop %v1673
          %s1675 = vtos %v1674
          %s1676 = smul.f32 25600.0, %s1675
          %s1677 = smul.f32 %s1453, %s1676
          %s1678 = sadd.f32 %s1670, %s1677
          %s1679 = smul.f32 %s1469, %s1638
          %s1680 = smax.f32 %s1679, 0.0001
          %v1681 = vstv %s1680
          %v1682 = vrcp.pop %v1681
          %s1683 = vtos %v1682
          %s1684 = smul.f32 25600.0, %s1683
          %s1685 = smul.f32 %s1482, %s1684
          %s1686 = sadd.f32 %s1678, %s1685
          %s1687 = smul.f32 %s1498, %s1638
          %s1688 = smax.f32 %s1687, 0.0001
          %v1689 = vstv %s1688
          %v1690 = vrcp.pop %v1689
          %s1691 = vtos %v1690
          %s1692 = smul.f32 25600.0, %s1691
          %s1693 = smul.f32 %s1511, %s1692
          %s1694 = sadd.f32 %s1686, %s1693
          %s1695 = smul.f32 %s1527, %s1638
          %s1696 = smax.f32 %s1695, 0.0001
          %v1697 = vstv %s1696
          %v1698 = vrcp.pop %v1697
          %s1699 = vtos %v1698
          %s1700 = smul.f32 25600.0, %s1699
          %s1701 = smul.f32 %s1540, %s1700
          %s1702 = sadd.f32 %s1694, %s1701
          %s1703 = smul.f32 %s1556, %s1638
          %s1704 = smax.f32 %s1703, 0.0001
          %v1705 = vstv %s1704
          %v1706 = vrcp.pop %v1705
          %s1707 = vtos %v1706
          %s1708 = smul.f32 25600.0, %s1707
          %s1709 = smul.f32 %s1569, %s1708
          %s1710 = sadd.f32 %s1702, %s1709
          %s1711 = smul.f32 %s1585, %s1638
          %s1712 = smax.f32 %s1711, 0.0001
          %v1713 = vstv %s1712
          %v1714 = vrcp.pop %v1713
          %s1715 = vtos %v1714
          %s1716 = smul.f32 25600.0, %s1715
          %s1717 = smul.f32 %s1598, %s1716
          %s1718 = sadd.f32 %s1710, %s1717
          %v1719 = vrcp.pop 25600.0
          %s1720 = vtos %v1719
          %s1721 = smul.f32 %s1718, %s1720
          %s1722 = scalar_lea.smem [#allocation12], 0
          %1723 = sst [smem:[%s1722]] %s1721
        $region56: #{tpu_custom_call.1} parent=35 // pred_fallthru
          _
        // Predicated region
        $region57: #{tpu_custom_call.1} parent=35 // pred_check
          %p1724 = pneg %p134
        $region58: #{tpu_custom_call.1} parent=35 // pred_check_branch
          %1726 = sbr.rel (%p1724) target = $region60
        $region59: #{tpu_custom_call.1} parent=35 // pred_region
          %s1728 = ssub.s32 16, 16
          %1729 = vsyncadd [#allocation7], %s1728
          %1732 = dma.smem_to_hbm [#allocation12], 16, %s4, [#allocation7]
        $region60: #{tpu_custom_call.1} parent=35 // pred_fallthru
          _
        // Predicated region
        $region61: #{tpu_custom_call.1} parent=35 // pred_check
          %p1733 = pneg %p155
        $region62: #{tpu_custom_call.1} parent=35 // pred_check_branch
          %1735 = sbr.rel (%p1733) target = $region64
        $region63: #{tpu_custom_call.1} parent=35 // pred_region
          %s1737 = ssub.s32 16, 16
          %1738 = vsyncadd [#allocation14], %s1737
          %1741 = dma.smem_to_hbm [#allocation13], 16, %s5, [#allocation14]
        $region64: #{tpu_custom_call.1} parent=35 // pred_fallthru
          _
        // Predicated region
        $region65: #{tpu_custom_call.1} parent=35 // pred_check
          %p1742 = pneg %p134
        $region66: #{tpu_custom_call.1} parent=35 // pred_check_branch
          %1744 = sbr.rel (%p1742) target = $region68
        $region67: #{tpu_custom_call.1} parent=35 // pred_region
          %1745 = dma.done [#allocation7], 16
        $region68: #{tpu_custom_call.1} parent=35 // pred_fallthru
          _
        // Predicated region
        $region69: #{tpu_custom_call.1} parent=35 // pred_check
          %p1746 = pneg %p155
        $region70: #{tpu_custom_call.1} parent=35 // pred_check_branch
          %1748 = sbr.rel (%p1746) target = $region72
        $region71: #{tpu_custom_call.1} parent=35 // pred_region
          %1749 = dma.done [#allocation14], 16
        $region72: #{tpu_custom_call.1} parent=35 // pred_fallthru
          _
        %1750 = sfence
      $region36: #{tpu_custom_call.1} parent=5 // pred_fallthru
        _
      %p1751 = scmp.le.s32.totalorder 2, %s22
      // Predicated region
      $region73: #{tpu_custom_call.1} parent=5 // pred_check
        %p1752 = pneg %p1751
      $region74: #{tpu_custom_call.1} parent=5 // pred_check_branch
        %1754 = sbr.rel (%p1752) target = $region76
      $region75: #{tpu_custom_call.1} parent=5 // pred_region
        %s1755 = ssub.s32 %s22, 2
      $region76: #{tpu_custom_call.1} parent=5 // pred_fallthru
        _
    $region6: #{tpu_custom_call.1} parent=1 // loop_footer
      %s26 = sadd.s32 1, %s22
    $region7: #{tpu_custom_call.1} parent=1 // loop_footer_branch
      %21 = sbr.rel target = $region3
    $region8: #{tpu_custom_call.1} parent=1 // loop_exit
      _
    %1756 = vsyncpa [#allocation6], 1
    %s1757 = scalar_lea.sflag [#allocation6], 1
    %1758 = vsyncpa %s1757, 1
    %1759 = vsyncpa [#allocation11], 1
    %s1760 = scalar_lea.sflag [#allocation11], 1
    %1761 = vsyncpa %s1760, 1
    %1762 = vsyncpa [#allocation7], 1
    %s1763 = scalar_lea.sflag [#allocation7], 1
    %1764 = vsyncpa %s1763, 1
    %1765 = vsyncpa [#allocation14], 1
    %1766 = vsyncpa [#allocation8], 1
    %s1767 = scalar_lea.sflag [#allocation8], 1
    %1768 = vsyncpa %s1767, 1

</llo_original>
